<compile_context>
chip_gen: v7x
topology: tpu7x:2x2x1
jax: 0.10.0
libtpu: 0.0.40
codegen_flags: <defaults>
</compile_context>

<pallas_src>
import numpy as np
import jax
import jax.numpy as jnp
from jax import lax
from jax.experimental import pallas as pl
from jax.experimental.pallas import tpu as pltpu


# ----------------------------------------------------------------------------
# Fused Pallas kernel (expand -> depthwise -> project) for one output row tile
# ----------------------------------------------------------------------------
def _make_fused_kernel(*, H, W, K, stride, pad, tro, Wp, Cin, Cexp, Cout,
                       has_residual):
    """Builds the fused kernel.  Static shapes are baked in via closure.

    Per grid step (n, r) the kernel:
      1) loads the halo'd input-row window of the (pre-padded) NHWC image,
      2) runs the 1x1 expansion as a matmul + folded BN + ReLU6,
      3) zeroes the spatial zero-padding ring with precomputed mask planes,
      4) accumulates the KxK depthwise conv taps in f32 + folded BN + ReLU6,
      5) runs the 1x1 projection as a matmul + folded BN (+ residual),
      6) stores one (tro, Wo, Cout) output row tile.
    """
    Wo = (W + 2 * pad - K) // stride + 1          # true output width
    TRi = (tro - 1) * stride + K                  # input rows (incl. halo) per tile
    row_step = tro * stride                       # first padded row of tile r

    def kernel(x_ref, rmask_ref, cmask_ref,
               we_ref, se_ref, be_ref,
               wd_ref, sd_ref, bd_ref,
               wp_ref, sp_ref, bp_ref,
               o_ref):
        r = pl.program_id(1)
        row0 = pl.multiple_of(r * row_step, row_step)

        # ---- 1x1 expansion conv + BN + ReLU6 on the halo'd row window -------
        xin = x_ref[0, pl.ds(row0, TRi), :, :]                    # (TRi, Wp, Cin)
        y = jnp.dot(xin.reshape(TRi * Wp, Cin), we_ref[...],
                    preferred_element_type=jnp.float32)           # (TRi*Wp, Cexp)
        y = y * se_ref[0, :] + be_ref[0, :]
        y = jnp.clip(y, 0.0, 6.0).reshape(TRi, Wp, Cexp)
        # Zero the zero-padding ring (BN bias + ReLU6 made it non-zero there).
        y = y * rmask_ref[0] * cmask_ref[...]                     # (TRi, Wp, Cexp)

        # ---- KxK depthwise conv + BN + ReLU6 (f32 accumulator, per tile) ----
        acc = jnp.zeros((tro, Wo, Cexp), jnp.float32)
        for kh in range(K):
            for kw in range(K):
                patch = lax.slice(
                    y,
                    (kh, kw, 0),
                    (kh + (tro - 1) * stride + 1,
                     kw + (Wo - 1) * stride + 1,
                     Cexp),
                    (stride, stride, 1))                          # (tro, Wo, Cexp)
                acc = acc + patch * wd_ref[kh * K + kw, :]
        z = acc * sd_ref[0, :] + bd_ref[0, :]
        z = jnp.clip(z, 0.0, 6.0)

        # ---- 1x1 projection conv + BN (+ residual) --------------------------
        p = jnp.dot(z.reshape(tro * Wo, Cexp), wp_ref[...],
                    preferred_element_type=jnp.float32)           # (tro*Wo, Cout)
        p = p * sp_ref[0, :] + bp_ref[0, :]
        if has_residual:
            xres = x_ref[0, pl.ds(row0 + pad, tro), :, :]         # (tro, Wp, Cin)
            xres = xres[:, pad:pad + W, :]                        # drop W padding
            p = p + xres.reshape(tro * W, Cin)

        # NOTE: with Cout this small the final store is lane-sparse; after
        # fusion the output traffic is negligible.  For wide blocks, emit the
        # output as (N, Cout, Ho*Wo) (NCHW with spatial on lanes) instead.
        o_ref[...] = p.reshape(1, tro, Wo, Cout).astype(o_ref.dtype)

    return kernel


def _pick_row_tile(Ho, Wo, max_pixels=2048):
    """Largest divisor of Ho keeping the per-tile output <= max_pixels pixels."""
    best = 1
    for d in range(1, Ho + 1):
        if Ho % d == 0 and d * Wo <= max_pixels:
            best = d
    return best


# ----------------------------------------------------------------------------
# Block forward
# ----------------------------------------------------------------------------
def inverted_bottleneck_forward(x_nchw, params, *, stride, kernel_size,
                                use_se=False, tile_rows=None):
    # TODO(synk): hardswish_se_block is not defined in the reference source;
    # the use_se=True branch is not implemented (module default is use_se=False).
    assert not use_se, "use_se=True path not implemented"

    N, Cin, H, W = x_nchw.shape
    Cexp = params["w_exp"].shape[1]
    Cout = params["w_proj"].shape[1]
    K = kernel_size
    pad = (K - 1) // 2
    Hp = H + 2 * pad
    # Round the padded width up to a multiple of 8 so all in-kernel reshapes
    # are sublane-tile aligned (extra columns are zero and masked anyway).
    Wp = ((W + 2 * pad + 7) // 8) * 8
    Ho = (H + 2 * pad - K) // stride + 1
    Wo = (W + 2 * pad - K) // stride + 1
    has_residual = (stride != 2) and (Cin == Cout)

    tro = tile_rows if tile_rows is not None else _pick_row_tile(Ho, Wo)
    assert Ho % tro == 0, f"tile_rows={tro} must divide Ho={Ho}"
    R = Ho // tro
    TRi = (tro - 1) * stride + K

    # NHWC + spatial zero-pad of the *small* Cin-channel input.  Only x is
    # padded in HBM -- the big Cexp intermediate never leaves VMEM.
    x_nhwc = jnp.transpose(x_nchw, (0, 2, 3, 1))
    xp = jnp.pad(x_nhwc, ((0, 0), (pad, pad), (pad, Wp - W - pad), (0, 0)))

    # Per-row-tile / per-column validity masks for the padding ring (tiny; the
    # row mask is delivered per tile by its BlockSpec index_map).
    prow = np.arange(R)[:, None] * (tro * stride) + np.arange(TRi)[None, :]
    row_valid = ((prow >= pad) & (prow < pad + H)).astype(np.float32)     # (R, TRi)
    row_mask = jnp.asarray(
        np.broadcast_to(row_valid[:, :, None, None], (R, TRi, 1, Cexp)).copy())
    pcol = np.arange(Wp)
    col_valid = ((pcol >= pad) & (pcol < pad + W)).astype(np.float32)     # (Wp,)
    col_mask = jnp.asarray(
        np.broadcast_to(col_valid[None, :, None], (1, Wp, Cexp)).copy())

    kernel = _make_fused_kernel(H=H, W=W, K=K, stride=stride, pad=pad, tro=tro,
                                Wp=Wp, Cin=Cin, Cexp=Cexp, Cout=Cout,
                                has_residual=has_residual)

    flops = 2 * N * (H * W * Cin * Cexp
                     + Ho * Wo * K * K * Cexp
                     + Ho * Wo * Cexp * Cout)
    bytes_accessed = 4 * (N * Hp * Wp * Cin + N * Ho * Wo * Cout
                          + Cin * Cexp + K * K * Cexp + Cexp * Cout
                          + 3 * Cexp + 3 * Cout)

    out_nhwc = pl.pallas_call(
        kernel,
        out_shape=jax.ShapeDtypeStruct((N, Ho, Wo, Cout), x_nchw.dtype),
        grid=(N, R),
        in_specs=[
            pl.BlockSpec((1, Hp, Wp, Cin), lambda n, r: (n, 0, 0, 0)),    # x (padded)
            pl.BlockSpec((1, TRi, 1, Cexp), lambda n, r: (r, 0, 0, 0)),   # row mask
            pl.BlockSpec((1, Wp, Cexp), lambda n, r: (0, 0, 0)),          # col mask
            pl.BlockSpec((Cin, Cexp), lambda n, r: (0, 0)),               # w_exp
            pl.BlockSpec((1, Cexp), lambda n, r: (0, 0)),                 # s_exp
            pl.BlockSpec((1, Cexp), lambda n, r: (0, 0)),                 # b_exp
            pl.BlockSpec((K * K, Cexp), lambda n, r: (0, 0)),             # w_dw
            pl.BlockSpec((1, Cexp), lambda n, r: (0, 0)),                 # s_dw
            pl.BlockSpec((1, Cexp), lambda n, r: (0, 0)),                 # b_dw
            pl.BlockSpec((Cexp, Cout), lambda n, r: (0, 0)),              # w_proj
            pl.BlockSpec((1, Cout), lambda n, r: (0, 0)),                 # s_proj
            pl.BlockSpec((1, Cout), lambda n, r: (0, 0)),                 # b_proj
        ],
        out_specs=pl.BlockSpec((1, tro, Wo, Cout), lambda n, r: (n, r, 0, 0)),
        compiler_params=pltpu.CompilerParams(
            dimension_semantics=("parallel", "parallel"),
            vmem_limit_bytes=32 * 1024 * 1024),
        cost_estimate=pl.CostEstimate(flops=flops, transcendentals=0,
                                      bytes_accessed=bytes_accessed),
    )(xp, row_mask, col_mask,
      params["w_exp"], params["s_exp"], params["b_exp"],
      params["w_dw"], params["s_dw"], params["b_dw"],
      params["w_proj"], params["s_proj"], params["b_proj"])

    # Back to NCHW (tiny tensor: only Cout channels).
    return jnp.transpose(out_nhwc, (0, 3, 1, 2))


# ----------------------------------------------------------------------------
# Deterministic parameter construction
# ----------------------------------------------------------------------------
def make_params(key, in_channels, expansion_out, out_channels, kernel_size):
    ks = jax.random.split(key, 16)
    eps = 1e-5

    # PyTorch-layout (OIHW) weights for the reference conv computation.
    w_exp_oihw = 0.1 * jax.random.normal(ks[0], (expansion_out, in_channels, 1, 1), jnp.float32)
    w_dw_oihw = 0.1 * jax.random.normal(ks[1], (expansion_out, 1, kernel_size, kernel_size), jnp.float32)
    w_proj_oihw = 0.1 * jax.random.normal(ks[2], (out_channels, expansion_out, 1, 1), jnp.float32)

    def folded_bn(kg, kb, km, kv, c):
        gamma = 1.0 + 0.1 * jax.random.normal(kg, (c,), jnp.float32)
        beta = 0.1 * jax.random.normal(kb, (c,), jnp.float32)
        mean = 0.1 * jax.random.normal(km, (c,), jnp.float32)
        var = jax.random.uniform(kv, (c,), jnp.float32, minval=0.5, maxval=1.5)
        scale = gamma / jnp.sqrt(var + eps)
        bias = beta - mean * scale
        return scale, bias

    s_exp, b_exp = folded_bn(ks[3], ks[4], ks[5], ks[6], expansion_out)
    s_dw, b_dw = folded_bn(ks[7], ks[8], ks[9], ks[10], expansion_out)
    s_proj, b_proj = folded_bn(ks[11], ks[12], ks[13], ks[14], out_channels)

    raw = dict(w_exp_oihw=w_exp_oihw, w_dw_oihw=w_dw_oihw, w_proj_oihw=w_proj_oihw,
               s_exp=s_exp, b_exp=b_exp, s_dw=s_dw, b_dw=b_dw,
               s_proj=s_proj, b_proj=b_proj)

    # Kernel-friendly layouts.
    params = dict(
        w_exp=w_exp_oihw.reshape(expansion_out, in_channels).T,                     # (Cin, Cexp)
        w_dw=jnp.transpose(w_dw_oihw[:, 0], (1, 2, 0)).reshape(-1, expansion_out),  # (K*K, Cexp)
        w_proj=w_proj_oihw.reshape(out_channels, expansion_out).T,                  # (Cexp, Cout)
        s_exp=s_exp.reshape(1, -1), b_exp=b_exp.reshape(1, -1),
        s_dw=s_dw.reshape(1, -1), b_dw=b_dw.reshape(1, -1),
        s_proj=s_proj.reshape(1, -1), b_proj=b_proj.reshape(1, -1),
    )
    return params, raw


# Pure-JAX reference (same math as the PyTorch module in eval mode).
def ref_forward(x_nchw, raw, *, stride, kernel_size, in_channels, out_channels):
    pad = (kernel_size - 1) // 2
    y = lax.conv_general_dilated(x_nchw, raw["w_exp_oihw"], (1, 1), "VALID",
                                 dimension_numbers=("NCHW", "OIHW", "NCHW"))
    y = y * raw["s_exp"][None, :, None, None] + raw["b_exp"][None, :, None, None]
    y = jnp.clip(y, 0.0, 6.0)
    y = lax.conv_general_dilated(y, raw["w_dw_oihw"], (stride, stride),
                                 [(pad, pad), (pad, pad)],
                                 feature_group_count=raw["w_dw_oihw"].shape[0],
                                 dimension_numbers=("NCHW", "OIHW", "NCHW"))
    y = y * raw["s_dw"][None, :, None, None] + raw["b_dw"][None, :, None, None]
    y = jnp.clip(y, 0.0, 6.0)
    y = lax.conv_general_dilated(y, raw["w_proj_oihw"], (1, 1), "VALID",
                                 dimension_numbers=("NCHW", "OIHW", "NCHW"))
    y = y * raw["s_proj"][None, :, None, None] + raw["b_proj"][None, :, None, None]
    if stride != 2 and in_channels == out_channels:
        y = y + x_nchw
    return y


if __name__ == "__main__":
    # Small shapes consistent with the module:
    #   batch=2, in_channels=4, expansion_out=16, out_channels=4, H=W=16,
    #   stride=1, kernel_size=3  -> residual path is active.
    N, Cin, H, W = 2, 4, 16, 16
    Cexp, Cout = 16, 4
    stride, ksize = 1, 3

    key = jax.random.PRNGKey(0)
    kx, kp = jax.random.split(key)
    x = jax.random.normal(kx, (N, Cin, H, W), jnp.float32)
    params, raw = make_params(kp, Cin, Cexp, Cout, ksize)

    # tile_rows=8 -> grid = (batch=2, row_tiles=2); exercises the halo logic.
    out = inverted_bottleneck_forward(x, params, stride=stride,
                                      kernel_size=ksize, tile_rows=8)
    out = jax.block_until_ready(out)

    ref = ref_forward(x, raw, stride=stride, kernel_size=ksize,
                      in_channels=Cin, out_channels=Cout)
    ref = jax.block_until_ready(ref)

    assert out.shape == (N, Cout, H, W), out.shape
    assert jnp.allclose(out, ref, atol=1e-4, rtol=1e-4), \
        f"max abs err {jnp.max(jnp.abs(out - ref))}"
    print("KERNEL_OK")
</pallas_src>

<mosaic_0001>
module attributes {stable_mosaic.version = 11 : i64} {
  func.func @kernel(%arg0: i32, %arg1: i32, %arg2: memref<1x18x24x4xf32, #tpu.memory_space<vmem>>, %arg3: memref<1x10x1x16xf32, #tpu.memory_space<vmem>>, %arg4: memref<1x24x16xf32, #tpu.memory_space<vmem>>, %arg5: memref<4x16xf32, #tpu.memory_space<vmem>>, %arg6: memref<1x16xf32, #tpu.memory_space<vmem>>, %arg7: memref<1x16xf32, #tpu.memory_space<vmem>>, %arg8: memref<9x16xf32, #tpu.memory_space<vmem>>, %arg9: memref<1x16xf32, #tpu.memory_space<vmem>>, %arg10: memref<1x16xf32, #tpu.memory_space<vmem>>, %arg11: memref<16x4xf32, #tpu.memory_space<vmem>>, %arg12: memref<1x4xf32, #tpu.memory_space<vmem>>, %arg13: memref<1x4xf32, #tpu.memory_space<vmem>>, %arg14: memref<1x8x16x4xf32, #tpu.memory_space<vmem>>) attributes {dimension_semantics = [#tpu.dimension_semantics<parallel>, #tpu.dimension_semantics<parallel>], iteration_bounds = array<i64: 2, 2>, scalar_prefetch = 0 : i64, scratch_operands = 0 : i64, tpu.core_type = #tpu.core_type<tc>, window_params = [{transform_indices = @transform_0, window_bounds = array<i64: 1, 18, 24, 4>}, {transform_indices = @transform_1, window_bounds = array<i64: 1, 10, 1, 16>}, {pipeline_mode = #tpu.pipeline_mode<synchronous>, transform_indices = @transform_2, window_bounds = array<i64: 1, 24, 16>}, {pipeline_mode = #tpu.pipeline_mode<synchronous>, transform_indices = @transform_3, window_bounds = array<i64: 4, 16>}, {pipeline_mode = #tpu.pipeline_mode<synchronous>, transform_indices = @transform_4, window_bounds = array<i64: 1, 16>}, {pipeline_mode = #tpu.pipeline_mode<synchronous>, transform_indices = @transform_5, window_bounds = array<i64: 1, 16>}, {pipeline_mode = #tpu.pipeline_mode<synchronous>, transform_indices = @transform_6, window_bounds = array<i64: 9, 16>}, {pipeline_mode = #tpu.pipeline_mode<synchronous>, transform_indices = @transform_7, window_bounds = array<i64: 1, 16>}, {pipeline_mode = #tpu.pipeline_mode<synchronous>, transform_indices = @transform_8, window_bounds = array<i64: 1, 16>}, {pipeline_mode = #tpu.pipeline_mode<synchronous>, transform_indices = @transform_9, window_bounds = array<i64: 16, 4>}, {pipeline_mode = #tpu.pipeline_mode<synchronous>, transform_indices = @transform_10, window_bounds = array<i64: 1, 4>}, {pipeline_mode = #tpu.pipeline_mode<synchronous>, transform_indices = @transform_11, window_bounds = array<i64: 1, 4>}, {transform_indices = @transform_12, window_bounds = array<i64: 1, 8, 16, 4>}]} {
    %c8_i32 = arith.constant 8 : i32
    %0 = arith.muli %arg1, %c8_i32 : i32
    %1 = tpu.assume_multiple %0, 8 : i32
    %c0 = arith.constant 0 : index
    %2 = arith.index_cast %1 : i32 to index
    %c0_0 = arith.constant 0 : index
    %c0_1 = arith.constant 0 : index
    %3 = vector.load %arg2[%c0, %2, %c0_0, %c0_1] : memref<1x18x24x4xf32, #tpu.memory_space<vmem>>, vector<1x10x24x4xf32>
    %4 = vector.shape_cast %3 : vector<1x10x24x4xf32> to vector<10x24x4xf32>
    %5 = vector.shape_cast %4 : vector<10x24x4xf32> to vector<240x4xf32>
    %c0_2 = arith.constant 0 : index
    %c0_3 = arith.constant 0 : index
    %6 = vector.load %arg5[%c0_2, %c0_3] : memref<4x16xf32, #tpu.memory_space<vmem>>, vector<4x16xf32>
    %cst = arith.constant dense<0.000000e+00> : vector<240x16xf32>
    %7 = tpu.matmul %5, %6, %cst {dimension_numbers = #tpu.dot_dimension_numbers<[1], [0], [0], [1], [0, 0, 1, 1], [], []>} : vector<240x4xf32>, vector<4x16xf32>, vector<240x16xf32> -> vector<240x16xf32>
    %c0_4 = arith.constant 0 : index
    %c0_5 = arith.constant 0 : index
    %8 = vector.load %arg6[%c0_4, %c0_5] : memref<1x16xf32, #tpu.memory_space<vmem>>, vector<1x16xf32>
    %9 = vector.shape_cast %8 : vector<1x16xf32> to vector<16xf32>
    %10 = vector.shape_cast %9 : vector<16xf32> to vector<1x16xf32>
    %11 = vector.broadcast %10 : vector<1x16xf32> to vector<240x16xf32>
    %12 = arith.mulf %7, %11 : vector<240x16xf32>
    %c0_6 = arith.constant 0 : index
    %c0_7 = arith.constant 0 : index
    %13 = vector.load %arg7[%c0_6, %c0_7] : memref<1x16xf32, #tpu.memory_space<vmem>>, vector<1x16xf32>
    %14 = vector.shape_cast %13 : vector<1x16xf32> to vector<16xf32>
    %15 = vector.shape_cast %14 : vector<16xf32> to vector<1x16xf32>
    %16 = vector.broadcast %15 : vector<1x16xf32> to vector<240x16xf32>
    %17 = arith.addf %12, %16 : vector<240x16xf32>
    %cst_8 = arith.constant 0.000000e+00 : f32
    %cst_9 = arith.constant 6.000000e+00 : f32
    %18 = vector.broadcast %cst_8 : f32 to vector<240x16xf32>
    %19 = arith.maximumf %18, %17 : vector<240x16xf32>
    %20 = vector.broadcast %cst_9 : f32 to vector<240x16xf32>
    %21 = arith.minimumf %20, %19 : vector<240x16xf32>
    %22 = vector.shape_cast %21 : vector<240x16xf32> to vector<10x24x16xf32>
    %c0_10 = arith.constant 0 : index
    %c0_11 = arith.constant 0 : index
    %c0_12 = arith.constant 0 : index
    %c0_13 = arith.constant 0 : index
    %23 = vector.load %arg3[%c0_10, %c0_11, %c0_12, %c0_13] : memref<1x10x1x16xf32, #tpu.memory_space<vmem>>, vector<1x10x1x16xf32>
    %24 = vector.shape_cast %23 : vector<1x10x1x16xf32> to vector<10x1x16xf32>
    %25 = vector.broadcast %24 : vector<10x1x16xf32> to vector<10x24x16xf32>
    %26 = arith.mulf %22, %25 : vector<10x24x16xf32>
    %c0_14 = arith.constant 0 : index
    %c0_15 = arith.constant 0 : index
    %c0_16 = arith.constant 0 : index
    %27 = vector.load %arg4[%c0_14, %c0_15, %c0_16] : memref<1x24x16xf32, #tpu.memory_space<vmem>>, vector<1x24x16xf32>
    %28 = vector.broadcast %27 : vector<1x24x16xf32> to vector<10x24x16xf32>
    %29 = arith.mulf %26, %28 : vector<10x24x16xf32>
    %cst_17 = arith.constant 0.000000e+00 : f32
    %30 = vector.broadcast %cst_17 : f32 to vector<8x16x16xf32>
    %31 = vector.extract_strided_slice %29 {offsets = [0, 0, 0], sizes = [8, 16, 16], strides = [1, 1, 1]} : vector<10x24x16xf32> to vector<8x16x16xf32>
    %c0_18 = arith.constant 0 : index
    %c0_19 = arith.constant 0 : index
    %32 = vector.load %arg8[%c0_18, %c0_19] : memref<9x16xf32, #tpu.memory_space<vmem>>, vector<1x16xf32>
    %33 = vector.shape_cast %32 : vector<1x16xf32> to vector<16xf32>
    %34 = vector.shape_cast %33 : vector<16xf32> to vector<1x1x16xf32>
    %35 = vector.broadcast %34 : vector<1x1x16xf32> to vector<8x16x16xf32>
    %36 = arith.mulf %31, %35 : vector<8x16x16xf32>
    %37 = arith.addf %30, %36 : vector<8x16x16xf32>
    %38 = vector.extract_strided_slice %29 {offsets = [0, 1, 0], sizes = [8, 16, 16], strides = [1, 1, 1]} : vector<10x24x16xf32> to vector<8x16x16xf32>
    %c1 = arith.constant 1 : index
    %c0_20 = arith.constant 0 : index
    %39 = vector.load %arg8[%c1, %c0_20] : memref<9x16xf32, #tpu.memory_space<vmem>>, vector<1x16xf32>
    %40 = vector.shape_cast %39 : vector<1x16xf32> to vector<16xf32>
    %41 = vector.shape_cast %40 : vector<16xf32> to vector<1x1x16xf32>
    %42 = vector.broadcast %41 : vector<1x1x16xf32> to vector<8x16x16xf32>
    %43 = arith.mulf %38, %42 : vector<8x16x16xf32>
    %44 = arith.addf %37, %43 : vector<8x16x16xf32>
    %45 = vector.extract_strided_slice %29 {offsets = [0, 2, 0], sizes = [8, 16, 16], strides = [1, 1, 1]} : vector<10x24x16xf32> to vector<8x16x16xf32>
    %c2 = arith.constant 2 : index
    %c0_21 = arith.constant 0 : index
    %46 = vector.load %arg8[%c2, %c0_21] : memref<9x16xf32, #tpu.memory_space<vmem>>, vector<1x16xf32>
    %47 = vector.shape_cast %46 : vector<1x16xf32> to vector<16xf32>
    %48 = vector.shape_cast %47 : vector<16xf32> to vector<1x1x16xf32>
    %49 = vector.broadcast %48 : vector<1x1x16xf32> to vector<8x16x16xf32>
    %50 = arith.mulf %45, %49 : vector<8x16x16xf32>
    %51 = arith.addf %44, %50 : vector<8x16x16xf32>
    %52 = vector.extract_strided_slice %29 {offsets = [1, 0, 0], sizes = [8, 16, 16], strides = [1, 1, 1]} : vector<10x24x16xf32> to vector<8x16x16xf32>
    %c3 = arith.constant 3 : index
    %c0_22 = arith.constant 0 : index
    %53 = vector.load %arg8[%c3, %c0_22] : memref<9x16xf32, #tpu.memory_space<vmem>>, vector<1x16xf32>
    %54 = vector.shape_cast %53 : vector<1x16xf32> to vector<16xf32>
    %55 = vector.shape_cast %54 : vector<16xf32> to vector<1x1x16xf32>
    %56 = vector.broadcast %55 : vector<1x1x16xf32> to vector<8x16x16xf32>
    %57 = arith.mulf %52, %56 : vector<8x16x16xf32>
    %58 = arith.addf %51, %57 : vector<8x16x16xf32>
    %59 = vector.extract_strided_slice %29 {offsets = [1, 1, 0], sizes = [8, 16, 16], strides = [1, 1, 1]} : vector<10x24x16xf32> to vector<8x16x16xf32>
    %c4 = arith.constant 4 : index
    %c0_23 = arith.constant 0 : index
    %60 = vector.load %arg8[%c4, %c0_23] : memref<9x16xf32, #tpu.memory_space<vmem>>, vector<1x16xf32>
    %61 = vector.shape_cast %60 : vector<1x16xf32> to vector<16xf32>
    %62 = vector.shape_cast %61 : vector<16xf32> to vector<1x1x16xf32>
    %63 = vector.broadcast %62 : vector<1x1x16xf32> to vector<8x16x16xf32>
    %64 = arith.mulf %59, %63 : vector<8x16x16xf32>
    %65 = arith.addf %58, %64 : vector<8x16x16xf32>
    %66 = vector.extract_strided_slice %29 {offsets = [1, 2, 0], sizes = [8, 16, 16], strides = [1, 1, 1]} : vector<10x24x16xf32> to vector<8x16x16xf32>
    %c5 = arith.constant 5 : index
    %c0_24 = arith.constant 0 : index
    %67 = vector.load %arg8[%c5, %c0_24] : memref<9x16xf32, #tpu.memory_space<vmem>>, vector<1x16xf32>
    %68 = vector.shape_cast %67 : vector<1x16xf32> to vector<16xf32>
    %69 = vector.shape_cast %68 : vector<16xf32> to vector<1x1x16xf32>
    %70 = vector.broadcast %69 : vector<1x1x16xf32> to vector<8x16x16xf32>
    %71 = arith.mulf %66, %70 : vector<8x16x16xf32>
    %72 = arith.addf %65, %71 : vector<8x16x16xf32>
    %73 = vector.extract_strided_slice %29 {offsets = [2, 0, 0], sizes = [8, 16, 16], strides = [1, 1, 1]} : vector<10x24x16xf32> to vector<8x16x16xf32>
    %c6 = arith.constant 6 : index
    %c0_25 = arith.constant 0 : index
    %74 = vector.load %arg8[%c6, %c0_25] : memref<9x16xf32, #tpu.memory_space<vmem>>, vector<1x16xf32>
    %75 = vector.shape_cast %74 : vector<1x16xf32> to vector<16xf32>
    %76 = vector.shape_cast %75 : vector<16xf32> to vector<1x1x16xf32>
    %77 = vector.broadcast %76 : vector<1x1x16xf32> to vector<8x16x16xf32>
    %78 = arith.mulf %73, %77 : vector<8x16x16xf32>
    %79 = arith.addf %72, %78 : vector<8x16x16xf32>
    %80 = vector.extract_strided_slice %29 {offsets = [2, 1, 0], sizes = [8, 16, 16], strides = [1, 1, 1]} : vector<10x24x16xf32> to vector<8x16x16xf32>
    %c7 = arith.constant 7 : index
    %c0_26 = arith.constant 0 : index
    %81 = vector.load %arg8[%c7, %c0_26] : memref<9x16xf32, #tpu.memory_space<vmem>>, vector<1x16xf32>
    %82 = vector.shape_cast %81 : vector<1x16xf32> to vector<16xf32>
    %83 = vector.shape_cast %82 : vector<16xf32> to vector<1x1x16xf32>
    %84 = vector.broadcast %83 : vector<1x1x16xf32> to vector<8x16x16xf32>
    %85 = arith.mulf %80, %84 : vector<8x16x16xf32>
    %86 = arith.addf %79, %85 : vector<8x16x16xf32>
    %87 = vector.extract_strided_slice %29 {offsets = [2, 2, 0], sizes = [8, 16, 16], strides = [1, 1, 1]} : vector<10x24x16xf32> to vector<8x16x16xf32>
    %c8 = arith.constant 8 : index
    %c0_27 = arith.constant 0 : index
    %88 = vector.load %arg8[%c8, %c0_27] : memref<9x16xf32, #tpu.memory_space<vmem>>, vector<1x16xf32>
    %89 = vector.shape_cast %88 : vector<1x16xf32> to vector<16xf32>
    %90 = vector.shape_cast %89 : vector<16xf32> to vector<1x1x16xf32>
    %91 = vector.broadcast %90 : vector<1x1x16xf32> to vector<8x16x16xf32>
    %92 = arith.mulf %87, %91 : vector<8x16x16xf32>
    %93 = arith.addf %86, %92 : vector<8x16x16xf32>
    %c0_28 = arith.constant 0 : index
    %c0_29 = arith.constant 0 : index
    %94 = vector.load %arg9[%c0_28, %c0_29] : memref<1x16xf32, #tpu.memory_space<vmem>>, vector<1x16xf32>
    %95 = vector.shape_cast %94 : vector<1x16xf32> to vector<16xf32>
    %96 = vector.shape_cast %95 : vector<16xf32> to vector<1x1x16xf32>
    %97 = vector.broadcast %96 : vector<1x1x16xf32> to vector<8x16x16xf32>
    %98 = arith.mulf %93, %97 : vector<8x16x16xf32>
    %c0_30 = arith.constant 0 : index
    %c0_31 = arith.constant 0 : index
    %99 = vector.load %arg10[%c0_30, %c0_31] : memref<1x16xf32, #tpu.memory_space<vmem>>, vector<1x16xf32>
    %100 = vector.shape_cast %99 : vector<1x16xf32> to vector<16xf32>
    %101 = vector.shape_cast %100 : vector<16xf32> to vector<1x1x16xf32>
    %102 = vector.broadcast %101 : vector<1x1x16xf32> to vector<8x16x16xf32>
    %103 = arith.addf %98, %102 : vector<8x16x16xf32>
    %cst_32 = arith.constant 0.000000e+00 : f32
    %cst_33 = arith.constant 6.000000e+00 : f32
    %104 = vector.broadcast %cst_32 : f32 to vector<8x16x16xf32>
    %105 = arith.maximumf %104, %103 : vector<8x16x16xf32>
    %106 = vector.broadcast %cst_33 : f32 to vector<8x16x16xf32>
    %107 = arith.minimumf %106, %105 : vector<8x16x16xf32>
    %108 = vector.shape_cast %107 : vector<8x16x16xf32> to vector<128x16xf32>
    %c0_34 = arith.constant 0 : index
    %c0_35 = arith.constant 0 : index
    %109 = vector.load %arg11[%c0_34, %c0_35] : memref<16x4xf32, #tpu.memory_space<vmem>>, vector<16x4xf32>
    %cst_36 = arith.constant dense<0.000000e+00> : vector<128x4xf32>
    %110 = tpu.matmul %108, %109, %cst_36 {dimension_numbers = #tpu.dot_dimension_numbers<[1], [0], [0], [1], [0, 0, 1, 1], [], []>} : vector<128x16xf32>, vector<16x4xf32>, vector<128x4xf32> -> vector<128x4xf32>
    %c0_37 = arith.constant 0 : index
    %c0_38 = arith.constant 0 : index
    %111 = vector.load %arg12[%c0_37, %c0_38] : memref<1x4xf32, #tpu.memory_space<vmem>>, vector<1x4xf32>
    %112 = vector.shape_cast %111 : vector<1x4xf32> to vector<4xf32>
    %113 = vector.shape_cast %112 : vector<4xf32> to vector<1x4xf32>
    %114 = vector.broadcast %113 : vector<1x4xf32> to vector<128x4xf32>
    %115 = arith.mulf %110, %114 : vector<128x4xf32>
    %c0_39 = arith.constant 0 : index
    %c0_40 = arith.constant 0 : index
    %116 = vector.load %arg13[%c0_39, %c0_40] : memref<1x4xf32, #tpu.memory_space<vmem>>, vector<1x4xf32>
    %117 = vector.shape_cast %116 : vector<1x4xf32> to vector<4xf32>
    %118 = vector.shape_cast %117 : vector<4xf32> to vector<1x4xf32>
    %119 = vector.broadcast %118 : vector<1x4xf32> to vector<128x4xf32>
    %120 = arith.addf %115, %119 : vector<128x4xf32>
    %c1_i32 = arith.constant 1 : i32
    %121 = arith.addi %1, %c1_i32 : i32
    %c0_41 = arith.constant 0 : index
    %122 = arith.index_cast %121 : i32 to index
    %c0_42 = arith.constant 0 : index
    %c0_43 = arith.constant 0 : index
    %123 = vector.load %arg2[%c0_41, %122, %c0_42, %c0_43] : memref<1x18x24x4xf32, #tpu.memory_space<vmem>>, vector<1x8x24x4xf32>
    %124 = vector.shape_cast %123 : vector<1x8x24x4xf32> to vector<8x24x4xf32>
    %125 = vector.extract_strided_slice %124 {offsets = [0, 1, 0], sizes = [8, 16, 4], strides = [1, 1, 1]} : vector<8x24x4xf32> to vector<8x16x4xf32>
    %126 = vector.shape_cast %125 : vector<8x16x4xf32> to vector<128x4xf32>
    %127 = arith.addf %120, %126 : vector<128x4xf32>
    %128 = vector.shape_cast %127 : vector<128x4xf32> to vector<1x8x16x4xf32>
    %c0_44 = arith.constant 0 : index
    %c0_45 = arith.constant 0 : index
    %c0_46 = arith.constant 0 : index
    %c0_47 = arith.constant 0 : index
    %129 = vector.load %arg14[%c0_44, %c0_45, %c0_46, %c0_47] : memref<1x8x16x4xf32, #tpu.memory_space<vmem>>, vector<1x8x16x4xf32>
    tpu.vector_store %arg14[%c0_44, %c0_45, %c0_46, %c0_47], %128 {strides = array<i32>} : memref<1x8x16x4xf32, #tpu.memory_space<vmem>>, vector<1x8x16x4xf32>,
    return
  }
  func.func @transform_0(%arg0: i32, %arg1: i32) -> (i32, i32, i32, i32) {
    %c0_i32 = arith.constant 0 : i32
    %c0_i32_0 = arith.constant 0 : i32
    %c0_i32_1 = arith.constant 0 : i32
    %c0_i32_2 = arith.constant 0 : i32
    return %arg0, %c0_i32, %c0_i32_0, %c0_i32_1 : i32, i32, i32, i32
  }
  func.func @transform_1(%arg0: i32, %arg1: i32) -> (i32, i32, i32, i32) {
    %c0_i32 = arith.constant 0 : i32
    %c0_i32_0 = arith.constant 0 : i32
    %c0_i32_1 = arith.constant 0 : i32
    %c0_i32_2 = arith.constant 0 : i32
    return %arg1, %c0_i32, %c0_i32_0, %c0_i32_1 : i32, i32, i32, i32
  }
  func.func @transform_2(%arg0: i32, %arg1: i32) -> (i32, i32, i32) {
    %c0_i32 = arith.constant 0 : i32
    %c0_i32_0 = arith.constant 0 : i32
    %c0_i32_1 = arith.constant 0 : i32
    %c0_i32_2 = arith.constant 0 : i32
    return %c0_i32, %c0_i32_0, %c0_i32_1 : i32, i32, i32
  }
  func.func @transform_3(%arg0: i32, %arg1: i32) -> (i32, i32) {
    %c0_i32 = arith.constant 0 : i32
    %c0_i32_0 = arith.constant 0 : i32
    %c0_i32_1 = arith.constant 0 : i32
    return %c0_i32, %c0_i32_0 : i32, i32
  }
  func.func @transform_4(%arg0: i32, %arg1: i32) -> (i32, i32) {
    %c0_i32 = arith.constant 0 : i32
    %c0_i32_0 = arith.constant 0 : i32
    %c0_i32_1 = arith.constant 0 : i32
    return %c0_i32, %c0_i32_0 : i32, i32
  }
  func.func @transform_5(%arg0: i32, %arg1: i32) -> (i32, i32) {
    %c0_i32 = arith.constant 0 : i32
    %c0_i32_0 = arith.constant 0 : i32
    %c0_i32_1 = arith.constant 0 : i32
    return %c0_i32, %c0_i32_0 : i32, i32
  }
  func.func @transform_6(%arg0: i32, %arg1: i32) -> (i32, i32) {
    %c0_i32 = arith.constant 0 : i32
    %c0_i32_0 = arith.constant 0 : i32
    %c0_i32_1 = arith.constant 0 : i32
    return %c0_i32, %c0_i32_0 : i32, i32
  }
  func.func @transform_7(%arg0: i32, %arg1: i32) -> (i32, i32) {
    %c0_i32 = arith.constant 0 : i32
    %c0_i32_0 = arith.constant 0 : i32
    %c0_i32_1 = arith.constant 0 : i32
    return %c0_i32, %c0_i32_0 : i32, i32
  }
  func.func @transform_8(%arg0: i32, %arg1: i32) -> (i32, i32) {
    %c0_i32 = arith.constant 0 : i32
    %c0_i32_0 = arith.constant 0 : i32
    %c0_i32_1 = arith.constant 0 : i32
    return %c0_i32, %c0_i32_0 : i32, i32
  }
  func.func @transform_9(%arg0: i32, %arg1: i32) -> (i32, i32) {
    %c0_i32 = arith.constant 0 : i32
    %c0_i32_0 = arith.constant 0 : i32
    %c0_i32_1 = arith.constant 0 : i32
    return %c0_i32, %c0_i32_0 : i32, i32
  }
  func.func @transform_10(%arg0: i32, %arg1: i32) -> (i32, i32) {
    %c0_i32 = arith.constant 0 : i32
    %c0_i32_0 = arith.constant 0 : i32
    %c0_i32_1 = arith.constant 0 : i32
    return %c0_i32, %c0_i32_0 : i32, i32
  }
  func.func @transform_11(%arg0: i32, %arg1: i32) -> (i32, i32) {
    %c0_i32 = arith.constant 0 : i32
    %c0_i32_0 = arith.constant 0 : i32
    %c0_i32_1 = arith.constant 0 : i32
    return %c0_i32, %c0_i32_0 : i32, i32
  }
  func.func @transform_12(%arg0: i32, %arg1: i32) -> (i32, i32, i32, i32) {
    %c0_i32 = arith.constant 0 : i32
    %c0_i32_0 = arith.constant 0 : i32
    %c0_i32_1 = arith.constant 0 : i32
    return %arg0, %arg1, %c0_i32, %c0_i32_0 : i32, i32, i32, i32
  }
}

</mosaic_0001>

<llo_original>
// kernel: tpu_custom_call.1
$region0: #{tpu_custom_call.1}
  #allocation0 [shape = 'u32[]', space=smem, size = 0x4, offset = 0x4, fixed_abs, tag = 'smem constant byte address 0x4 - core index']
  #allocation1 [shape = 'u32[144,128]{1,0:T(1,128)}', space=vmem, size = 0x12000, scoped, tag = 'internal scratch']
  %s0 = inlined_call_operand.vmem [shape: f32[2,18,24,4], index: 0, kind: input, shape index: {}]
  %s1 = inlined_call_operand.vmem [shape: f32[2,10,1,16], index: 1, kind: input, shape index: {}]
  %s2 = inlined_call_operand.vmem [shape: f32[1,24,16], index: 2, kind: input, shape index: {}]
  %s3 = inlined_call_operand.vmem [shape: f32[4,16], index: 3, kind: input, shape index: {}]
  %s4 = inlined_call_operand.vmem [shape: f32[1,16], index: 4, kind: input, shape index: {}]
  %s5 = inlined_call_operand.vmem [shape: f32[1,16], index: 5, kind: input, shape index: {}]
  %s6 = inlined_call_operand.vmem [shape: f32[9,16], index: 6, kind: input, shape index: {}]
  %s7 = inlined_call_operand.vmem [shape: f32[1,16], index: 7, kind: input, shape index: {}]
  %s8 = inlined_call_operand.vmem [shape: f32[1,16], index: 8, kind: input, shape index: {}]
  %s9 = inlined_call_operand.vmem [shape: f32[16,4], index: 9, kind: input, shape index: {}]
  %s10 = inlined_call_operand.vmem [shape: f32[1,4], index: 10, kind: input, shape index: {}]
  %s11 = inlined_call_operand.vmem [shape: f32[1,4], index: 11, kind: input, shape index: {}]
  %s12 = inlined_call_operand.vmem [shape: f32[2,16,16,4], index: 12, kind: output, shape index: {}]
  %s13 = sld [smem:[#allocation0]]
  $region81: #{tpu_custom_call.1} parent=0
    _
  %s15 = ssub.s32 1, %s13
  %s16 = scalar_select 0, %s15, %s13
  loop: start=0, step=1, limit=6
  $region2: #{tpu_custom_call.1} parent=0 // loop_pre_header
    _
  $region3: #{tpu_custom_call.1} parent=0 // loop_header
    %s18 = sphi 0, %s22
    %p19 = scmp.ge.s32.totalorder %s18, 6
    %s25 = sphi 0, %s37
    %s26 = sphi 0, %s33
    %s27 = sphi 0, %s25
    %s28 = sphi 0, %s26
    %s29 = sphi 0, %s27
    %s30 = sphi 0, %s28
    %s40 = sphi 0, %s42
    %s43 = sphi 0, %s40
    %s44 = sphi 0, %s43
    %s60 = sphi 0, %s44
    %s66 = sphi 0, %s68
    %s69 = sphi 0, %s66
    %s70 = sphi 0, %s69
    %s86 = sphi 0, %s70
    %s90 = sphi 0, %s90
    %s92 = sphi 0, %s90
    %s93 = sphi 0, %s92
    %s107 = sphi 0, %s93
    %s111 = sphi 0, %s111
    %s113 = sphi 0, %s111
    %s114 = sphi 0, %s113
    %s128 = sphi 0, %s114
    %s132 = sphi 0, %s132
    %s134 = sphi 0, %s132
    %s135 = sphi 0, %s134
    %s149 = sphi 0, %s135
    %s153 = sphi 0, %s153
    %s155 = sphi 0, %s153
    %s156 = sphi 0, %s155
    %s170 = sphi 0, %s156
    %s174 = sphi 0, %s174
    %s176 = sphi 0, %s174
    %s177 = sphi 0, %s176
    %s191 = sphi 0, %s177
    %s195 = sphi 0, %s195
    %s197 = sphi 0, %s195
    %s198 = sphi 0, %s197
    %s212 = sphi 0, %s198
    %s216 = sphi 0, %s216
    %s218 = sphi 0, %s216
    %s219 = sphi 0, %s218
    %s233 = sphi 0, %s219
    %s237 = sphi 0, %s237
    %s239 = sphi 0, %s237
    %s240 = sphi 0, %s239
    %s254 = sphi 0, %s240
    %s258 = sphi 0, %s258
    %s260 = sphi 0, %s258
    %s261 = sphi 0, %s260
    %s275 = sphi 0, %s261
    %s279 = sphi 0, %s279
    %s281 = sphi 0, %s279
    %s282 = sphi 0, %s281
    %s296 = sphi 0, %s282
    %s304 = sphi 0, %s306
    %s307 = sphi 0, %s304
    %s308 = sphi 0, %s307
    %s324 = sphi 0, %s308
  $region4: #{tpu_custom_call.1} parent=0 // loop_header_branch
    %21 = sbr.rel (%p19) target = $region8
  $region5: #{tpu_custom_call.1} parent=0 // loop_body
    %s23 = ssub.s32 %s18, 1
    %s24 = ssub.s32 %s18, 2
    %s31 = sadd.s32 1, %s26
    %p32 = scmp.ge.s32.totalorder %s31, 2
    %s33 = scalar_select %p32, 0, %s31
    %s34 = sadd.s32 1, %s25
    %s35 = scalar_select %p32, %s34, %s25
    %p36 = scmp.ge.s32.totalorder %s35, 2
    %s37 = scalar_select %p36, 0, %s35
    %s38 = ssub.s32 %s25, %s37
    %p39 = scmp.eq.s32.totalorder %s38, 0
    %s41 = sadd.s32 %s40, 1
    %s42 = scalar_select %p39, %s40, %s41
    %p45 = pneg %p39
    %p46 = scmp.eq.s32.totalorder %s18, 3
    %p47 = por %p45, %p46
    %p48 = scmp.ne.s32.totalorder %s40, %s43
    %p49 = scmp.eq.s32.totalorder %s18, 0
    %p50 = por %p48, %p49
    %p51 = scmp.ne.s32.totalorder %s40, %s43
    %p52 = scmp.eq.s32.totalorder %s23, 3
    %p53 = por %p51, %p52
    %p54 = scmp.ne.s32.totalorder %s43, %s44
    %p55 = scmp.eq.s32.totalorder %s23, 0
    %p56 = por %p54, %p55
    %p57 = scmp.ne.s32.totalorder %s43, %s44
    %p58 = scmp.eq.s32.totalorder %s24, 3
    %p59 = por %p57, %p58
    %p61 = scmp.ne.s32.totalorder %s44, %s60
    %p62 = scmp.eq.s32.totalorder %s24, 0
    %p63 = por %p61, %p62
    %s64 = ssub.s32 %s26, %s33
    %p65 = scmp.eq.s32.totalorder %s64, 0
    %s67 = sadd.s32 %s66, 1
    %s68 = scalar_select %p65, %s66, %s67
    %p71 = pneg %p65
    %p72 = scmp.eq.s32.totalorder %s18, 3
    %p73 = por %p71, %p72
    %p74 = scmp.ne.s32.totalorder %s66, %s69
    %p75 = scmp.eq.s32.totalorder %s18, 0
    %p76 = por %p74, %p75
    %p77 = scmp.ne.s32.totalorder %s66, %s69
    %p78 = scmp.eq.s32.totalorder %s23, 3
    %p79 = por %p77, %p78
    %p80 = scmp.ne.s32.totalorder %s69, %s70
    %p81 = scmp.eq.s32.totalorder %s23, 0
    %p82 = por %p80, %p81
    %p83 = scmp.ne.s32.totalorder %s69, %s70
    %p84 = scmp.eq.s32.totalorder %s24, 3
    %p85 = por %p83, %p84
    %p87 = scmp.ne.s32.totalorder %s70, %s86
    %p88 = scmp.eq.s32.totalorder %s24, 0
    %p89 = por %p87, %p88
    %s91 = sadd.s32 %s90, 1
    %p94 = scmp.eq.s32.totalorder %s18, 3
    %p95 = scmp.ne.s32.totalorder %s90, %s92
    %p96 = scmp.eq.s32.totalorder %s18, 0
    %p97 = por %p95, %p96
    %p98 = scmp.ne.s32.totalorder %s90, %s92
    %p99 = scmp.eq.s32.totalorder %s23, 3
    %p100 = por %p98, %p99
    %p101 = scmp.ne.s32.totalorder %s92, %s93
    %p102 = scmp.eq.s32.totalorder %s23, 0
    %p103 = por %p101, %p102
    %p104 = scmp.ne.s32.totalorder %s92, %s93
    %p105 = scmp.eq.s32.totalorder %s24, 3
    %p106 = por %p104, %p105
    %p108 = scmp.ne.s32.totalorder %s93, %s107
    %p109 = scmp.eq.s32.totalorder %s24, 0
    %p110 = por %p108, %p109
    %s112 = sadd.s32 %s111, 1
    %p115 = scmp.eq.s32.totalorder %s18, 3
    %p116 = scmp.ne.s32.totalorder %s111, %s113
    %p117 = scmp.eq.s32.totalorder %s18, 0
    %p118 = por %p116, %p117
    %p119 = scmp.ne.s32.totalorder %s111, %s113
    %p120 = scmp.eq.s32.totalorder %s23, 3
    %p121 = por %p119, %p120
    %p122 = scmp.ne.s32.totalorder %s113, %s114
    %p123 = scmp.eq.s32.totalorder %s23, 0
    %p124 = por %p122, %p123
    %p125 = scmp.ne.s32.totalorder %s113, %s114
    %p126 = scmp.eq.s32.totalorder %s24, 3
    %p127 = por %p125, %p126
    %p129 = scmp.ne.s32.totalorder %s114, %s128
    %p130 = scmp.eq.s32.totalorder %s24, 0
    %p131 = por %p129, %p130
    %s133 = sadd.s32 %s132, 1
    %p136 = scmp.eq.s32.totalorder %s18, 3
    %p137 = scmp.ne.s32.totalorder %s132, %s134
    %p138 = scmp.eq.s32.totalorder %s18, 0
    %p139 = por %p137, %p138
    %p140 = scmp.ne.s32.totalorder %s132, %s134
    %p141 = scmp.eq.s32.totalorder %s23, 3
    %p142 = por %p140, %p141
    %p143 = scmp.ne.s32.totalorder %s134, %s135
    %p144 = scmp.eq.s32.totalorder %s23, 0
    %p145 = por %p143, %p144
    %p146 = scmp.ne.s32.totalorder %s134, %s135
    %p147 = scmp.eq.s32.totalorder %s24, 3
    %p148 = por %p146, %p147
    %p150 = scmp.ne.s32.totalorder %s135, %s149
    %p151 = scmp.eq.s32.totalorder %s24, 0
    %p152 = por %p150, %p151
    %s154 = sadd.s32 %s153, 1
    %p157 = scmp.eq.s32.totalorder %s18, 3
    %p158 = scmp.ne.s32.totalorder %s153, %s155
    %p159 = scmp.eq.s32.totalorder %s18, 0
    %p160 = por %p158, %p159
    %p161 = scmp.ne.s32.totalorder %s153, %s155
    %p162 = scmp.eq.s32.totalorder %s23, 3
    %p163 = por %p161, %p162
    %p164 = scmp.ne.s32.totalorder %s155, %s156
    %p165 = scmp.eq.s32.totalorder %s23, 0
    %p166 = por %p164, %p165
    %p167 = scmp.ne.s32.totalorder %s155, %s156
    %p168 = scmp.eq.s32.totalorder %s24, 3
    %p169 = por %p167, %p168
    %p171 = scmp.ne.s32.totalorder %s156, %s170
    %p172 = scmp.eq.s32.totalorder %s24, 0
    %p173 = por %p171, %p172
    %s175 = sadd.s32 %s174, 1
    %p178 = scmp.eq.s32.totalorder %s18, 3
    %p179 = scmp.ne.s32.totalorder %s174, %s176
    %p180 = scmp.eq.s32.totalorder %s18, 0
    %p181 = por %p179, %p180
    %p182 = scmp.ne.s32.totalorder %s174, %s176
    %p183 = scmp.eq.s32.totalorder %s23, 3
    %p184 = por %p182, %p183
    %p185 = scmp.ne.s32.totalorder %s176, %s177
    %p186 = scmp.eq.s32.totalorder %s23, 0
    %p187 = por %p185, %p186
    %p188 = scmp.ne.s32.totalorder %s176, %s177
    %p189 = scmp.eq.s32.totalorder %s24, 3
    %p190 = por %p188, %p189
    %p192 = scmp.ne.s32.totalorder %s177, %s191
    %p193 = scmp.eq.s32.totalorder %s24, 0
    %p194 = por %p192, %p193
    %s196 = sadd.s32 %s195, 1
    %p199 = scmp.eq.s32.totalorder %s18, 3
    %p200 = scmp.ne.s32.totalorder %s195, %s197
    %p201 = scmp.eq.s32.totalorder %s18, 0
    %p202 = por %p200, %p201
    %p203 = scmp.ne.s32.totalorder %s195, %s197
    %p204 = scmp.eq.s32.totalorder %s23, 3
    %p205 = por %p203, %p204
    %p206 = scmp.ne.s32.totalorder %s197, %s198
    %p207 = scmp.eq.s32.totalorder %s23, 0
    %p208 = por %p206, %p207
    %p209 = scmp.ne.s32.totalorder %s197, %s198
    %p210 = scmp.eq.s32.totalorder %s24, 3
    %p211 = por %p209, %p210
    %p213 = scmp.ne.s32.totalorder %s198, %s212
    %p214 = scmp.eq.s32.totalorder %s24, 0
    %p215 = por %p213, %p214
    %s217 = sadd.s32 %s216, 1
    %p220 = scmp.eq.s32.totalorder %s18, 3
    %p221 = scmp.ne.s32.totalorder %s216, %s218
    %p222 = scmp.eq.s32.totalorder %s18, 0
    %p223 = por %p221, %p222
    %p224 = scmp.ne.s32.totalorder %s216, %s218
    %p225 = scmp.eq.s32.totalorder %s23, 3
    %p226 = por %p224, %p225
    %p227 = scmp.ne.s32.totalorder %s218, %s219
    %p228 = scmp.eq.s32.totalorder %s23, 0
    %p229 = por %p227, %p228
    %p230 = scmp.ne.s32.totalorder %s218, %s219
    %p231 = scmp.eq.s32.totalorder %s24, 3
    %p232 = por %p230, %p231
    %p234 = scmp.ne.s32.totalorder %s219, %s233
    %p235 = scmp.eq.s32.totalorder %s24, 0
    %p236 = por %p234, %p235
    %s238 = sadd.s32 %s237, 1
    %p241 = scmp.eq.s32.totalorder %s18, 3
    %p242 = scmp.ne.s32.totalorder %s237, %s239
    %p243 = scmp.eq.s32.totalorder %s18, 0
    %p244 = por %p242, %p243
    %p245 = scmp.ne.s32.totalorder %s237, %s239
    %p246 = scmp.eq.s32.totalorder %s23, 3
    %p247 = por %p245, %p246
    %p248 = scmp.ne.s32.totalorder %s239, %s240
    %p249 = scmp.eq.s32.totalorder %s23, 0
    %p250 = por %p248, %p249
    %p251 = scmp.ne.s32.totalorder %s239, %s240
    %p252 = scmp.eq.s32.totalorder %s24, 3
    %p253 = por %p251, %p252
    %p255 = scmp.ne.s32.totalorder %s240, %s254
    %p256 = scmp.eq.s32.totalorder %s24, 0
    %p257 = por %p255, %p256
    %s259 = sadd.s32 %s258, 1
    %p262 = scmp.eq.s32.totalorder %s18, 3
    %p263 = scmp.ne.s32.totalorder %s258, %s260
    %p264 = scmp.eq.s32.totalorder %s18, 0
    %p265 = por %p263, %p264
    %p266 = scmp.ne.s32.totalorder %s258, %s260
    %p267 = scmp.eq.s32.totalorder %s23, 3
    %p268 = por %p266, %p267
    %p269 = scmp.ne.s32.totalorder %s260, %s261
    %p270 = scmp.eq.s32.totalorder %s23, 0
    %p271 = por %p269, %p270
    %p272 = scmp.ne.s32.totalorder %s260, %s261
    %p273 = scmp.eq.s32.totalorder %s24, 3
    %p274 = por %p272, %p273
    %p276 = scmp.ne.s32.totalorder %s261, %s275
    %p277 = scmp.eq.s32.totalorder %s24, 0
    %p278 = por %p276, %p277
    %s280 = sadd.s32 %s279, 1
    %p283 = scmp.eq.s32.totalorder %s18, 3
    %p284 = scmp.ne.s32.totalorder %s279, %s281
    %p285 = scmp.eq.s32.totalorder %s18, 0
    %p286 = por %p284, %p285
    %p287 = scmp.ne.s32.totalorder %s279, %s281
    %p288 = scmp.eq.s32.totalorder %s23, 3
    %p289 = por %p287, %p288
    %p290 = scmp.ne.s32.totalorder %s281, %s282
    %p291 = scmp.eq.s32.totalorder %s23, 0
    %p292 = por %p290, %p291
    %p293 = scmp.ne.s32.totalorder %s281, %s282
    %p294 = scmp.eq.s32.totalorder %s24, 3
    %p295 = por %p293, %p294
    %p297 = scmp.ne.s32.totalorder %s282, %s296
    %p298 = scmp.eq.s32.totalorder %s24, 0
    %p299 = por %p297, %p298
    %s300 = ssub.s32 %s25, %s37
    %s301 = ssub.s32 %s26, %s33
    %s302 = sor.u32 %s300, %s301
    %p303 = scmp.eq.s32.totalorder %s302, 0
    %s305 = sadd.s32 %s304, 1
    %s306 = scalar_select %p303, %s304, %s305
    %p309 = pneg %p303
    %p310 = scmp.eq.s32.totalorder %s18, 3
    %p311 = por %p309, %p310
    %p312 = scmp.ne.s32.totalorder %s304, %s307
    %p313 = scmp.eq.s32.totalorder %s18, 0
    %p314 = por %p312, %p313
    %p315 = scmp.ne.s32.totalorder %s304, %s307
    %p316 = scmp.eq.s32.totalorder %s23, 3
    %p317 = por %p315, %p316
    %p318 = scmp.ne.s32.totalorder %s307, %s308
    %p319 = scmp.eq.s32.totalorder %s23, 0
    %p320 = por %p318, %p319
    %p321 = scmp.ne.s32.totalorder %s307, %s308
    %p322 = scmp.eq.s32.totalorder %s24, 3
    %p323 = por %p321, %p322
    %p325 = scmp.ne.s32.totalorder %s308, %s324
    %p326 = scmp.eq.s32.totalorder %s24, 0
    %p327 = por %p325, %p326
    %p328 = scmp.le.s32.totalorder 1, %s18
    %p329 = scmp.lt.s32.totalorder %s18, 5
    %p330 = pnand %p328, %p329
    %p331 = pneg %p330
    // Predicated region
    $region9: #{tpu_custom_call.1} parent=5 // pred_check
      _
    $region10: #{tpu_custom_call.1} parent=5 // pred_check_branch
      %333 = sbr.rel (%p330) target = $region12
    $region11: #{tpu_custom_call.1} parent=5 // pred_region
      %s334 = ssub.s32 %s18, 1
      // Predicated region
      $region13: #{tpu_custom_call.1} parent=11 // pred_check
        %p335 = pneg %p103
      $region14: #{tpu_custom_call.1} parent=11 // pred_check_branch
        %337 = sbr.rel (%p335) target = $region16
      $region15: #{tpu_custom_call.1} parent=11 // pred_region
        _
      $region16: #{tpu_custom_call.1} parent=11 // pred_fallthru
        _
      // Predicated region
      $region17: #{tpu_custom_call.1} parent=11 // pred_check
        %p338 = pneg %p124
      $region18: #{tpu_custom_call.1} parent=11 // pred_check_branch
        %340 = sbr.rel (%p338) target = $region20
      $region19: #{tpu_custom_call.1} parent=11 // pred_region
        _
      $region20: #{tpu_custom_call.1} parent=11 // pred_fallthru
        _
      // Predicated region
      $region21: #{tpu_custom_call.1} parent=11 // pred_check
        %p341 = pneg %p145
      $region22: #{tpu_custom_call.1} parent=11 // pred_check_branch
        %343 = sbr.rel (%p341) target = $region24
      $region23: #{tpu_custom_call.1} parent=11 // pred_region
        _
      $region24: #{tpu_custom_call.1} parent=11 // pred_fallthru
        _
      // Predicated region
      $region25: #{tpu_custom_call.1} parent=11 // pred_check
        %p344 = pneg %p166
      $region26: #{tpu_custom_call.1} parent=11 // pred_check_branch
        %346 = sbr.rel (%p344) target = $region28
      $region27: #{tpu_custom_call.1} parent=11 // pred_region
        _
      $region28: #{tpu_custom_call.1} parent=11 // pred_fallthru
        _
      // Predicated region
      $region29: #{tpu_custom_call.1} parent=11 // pred_check
        %p347 = pneg %p187
      $region30: #{tpu_custom_call.1} parent=11 // pred_check_branch
        %349 = sbr.rel (%p347) target = $region32
      $region31: #{tpu_custom_call.1} parent=11 // pred_region
        _
      $region32: #{tpu_custom_call.1} parent=11 // pred_fallthru
        _
      // Predicated region
      $region33: #{tpu_custom_call.1} parent=11 // pred_check
        %p350 = pneg %p208
      $region34: #{tpu_custom_call.1} parent=11 // pred_check_branch
        %352 = sbr.rel (%p350) target = $region36
      $region35: #{tpu_custom_call.1} parent=11 // pred_region
        _
      $region36: #{tpu_custom_call.1} parent=11 // pred_fallthru
        _
      // Predicated region
      $region37: #{tpu_custom_call.1} parent=11 // pred_check
        %p353 = pneg %p229
      $region38: #{tpu_custom_call.1} parent=11 // pred_check_branch
        %355 = sbr.rel (%p353) target = $region40
      $region39: #{tpu_custom_call.1} parent=11 // pred_region
        _
      $region40: #{tpu_custom_call.1} parent=11 // pred_fallthru
        _
      // Predicated region
      $region41: #{tpu_custom_call.1} parent=11 // pred_check
        %p356 = pneg %p250
      $region42: #{tpu_custom_call.1} parent=11 // pred_check_branch
        %358 = sbr.rel (%p356) target = $region44
      $region43: #{tpu_custom_call.1} parent=11 // pred_region
        _
      $region44: #{tpu_custom_call.1} parent=11 // pred_fallthru
        _
      // Predicated region
      $region45: #{tpu_custom_call.1} parent=11 // pred_check
        %p359 = pneg %p271
      $region46: #{tpu_custom_call.1} parent=11 // pred_check_branch
        %361 = sbr.rel (%p359) target = $region48
      $region47: #{tpu_custom_call.1} parent=11 // pred_region
        _
      $region48: #{tpu_custom_call.1} parent=11 // pred_fallthru
        _
      // Predicated region
      $region49: #{tpu_custom_call.1} parent=11 // pred_check
        %p362 = pneg %p292
      $region50: #{tpu_custom_call.1} parent=11 // pred_check_branch
        %364 = sbr.rel (%p362) target = $region52
      $region51: #{tpu_custom_call.1} parent=11 // pred_region
        _
      $region52: #{tpu_custom_call.1} parent=11 // pred_fallthru
        _
    $region12: #{tpu_custom_call.1} parent=5 // pred_fallthru
      _
    %p365 = scmp.lt.s32.totalorder %s18, 4
    // Predicated region
    $region53: #{tpu_custom_call.1} parent=5 // pred_check
      %p366 = pneg %p365
    $region54: #{tpu_custom_call.1} parent=5 // pred_check_branch
      %368 = sbr.rel (%p366) target = $region56
    $region55: #{tpu_custom_call.1} parent=5 // pred_region
      // Predicated region
      $region57: #{tpu_custom_call.1} parent=55 // pred_check
        %p369 = pneg %p50
      $region58: #{tpu_custom_call.1} parent=55 // pred_check_branch
        %371 = sbr.rel (%p369) target = $region60
      $region59: #{tpu_custom_call.1} parent=55 // pred_region
        %p372 = scmp.lt.s32.totalorder %s25, 1
        %s373 = scalar_select %p372, %s25, 1
        %s374 = smul.addr %s373, 54
        %s375 = smul.addr %s374, 8
        %s376 = scalar_lea.vmem %s0, %s375
      $region60: #{tpu_custom_call.1} parent=55 // pred_fallthru
        _
      // Predicated region
      $region61: #{tpu_custom_call.1} parent=55 // pred_check
        %p377 = pneg %p76
      $region62: #{tpu_custom_call.1} parent=55 // pred_check_branch
        %379 = sbr.rel (%p377) target = $region64
      $region63: #{tpu_custom_call.1} parent=55 // pred_region
        %p380 = scmp.lt.s32.totalorder %s26, 1
        %s381 = scalar_select %p380, %s26, 1
        %s382 = smul.addr %s381, 10
        %s383 = scalar_lea.vmem %s1, %s382
      $region64: #{tpu_custom_call.1} parent=55 // pred_fallthru
        _
    $region56: #{tpu_custom_call.1} parent=5 // pred_fallthru
      _
    %p384 = scmp.le.s32.totalorder 1, %s18
    %p385 = scmp.lt.s32.totalorder %s18, 5
    %p386 = pnand %p384, %p385
    %p387 = pneg %p386
    // Predicated region
    $region65: #{tpu_custom_call.1} parent=5 // pred_check
      _
    $region66: #{tpu_custom_call.1} parent=5 // pred_check_branch
      %389 = sbr.rel (%p386) target = $region68
    $region67: #{tpu_custom_call.1} parent=5 // pred_region
      %s390 = ssub.s32 %s18, 1
      %p391 = scmp.lt.s32.totalorder %s27, 1
      %s392 = scalar_select %p391, %s27, 1
      %s393 = smul.addr %s392, 54
      %s394 = smul.addr %s393, 8
      %s395 = scalar_lea.vmem %s0, %s394
      %p396 = pneg %p56
      %p397 = pneg %p53
      %p398 = scmp.lt.s32.totalorder %s28, 1
      %s399 = scalar_select %p398, %s28, 1
      %s400 = smul.addr %s399, 10
      %s401 = scalar_lea.vmem %s1, %s400
      %p402 = pneg %p82
      %p403 = pneg %p79
      %p404 = pneg %p103
      %p405 = pneg %p100
      %p406 = pneg %p124
      %p407 = pneg %p121
      %p408 = pneg %p145
      %p409 = pneg %p142
      %p410 = pneg %p166
      %p411 = pneg %p163
      %p412 = pneg %p187
      %p413 = pneg %p184
      %p414 = pneg %p208
      %p415 = pneg %p205
      %p416 = pneg %p229
      %p417 = pneg %p226
      %p418 = pneg %p250
      %p419 = pneg %p247
      %p420 = pneg %p271
      %p421 = pneg %p268
      %p422 = pneg %p292
      %p423 = pneg %p289
      %p424 = pneg %p320
      %p425 = pneg %p317
      %s426 = smul.u32 8, %s28
      %p427 = scmp.lt.s32.totalorder %s27, 1
      %s428 = scalar_select %p427, %s27, 1
      %p429 = scmp.lt.s32.totalorder %s426, 15
      %s430 = scalar_select %p429, %s426, 15
      %s431 = smul.addr %s430, 2
      %s432 = smul.addr %s428, 32
      %s433 = sadd.s32 %s431, %s432
      %s434 = smul.addr %s433, 8
      %s435 = scalar_lea.vmem %s12, %s434
      %p436 = scmp.lt.s32.totalorder %s27, 1
      %s437 = scalar_select %p436, %s27, 1
      %s438 = smul.addr %s437, 54
      %s439 = smul.addr %s438, 8
      %s440 = scalar_lea.vmem %s0, %s439
      %p441 = scmp.lt.s32.totalorder %s28, 1
      %s442 = scalar_select %p441, %s28, 1
      %s443 = smul.addr %s442, 10
      %s444 = scalar_lea.vmem %s1, %s443
      %s445 = smul.u32 8, %s28
      %p446 = scmp.lt.s32.totalorder %s27, 1
      %s447 = scalar_select %p446, %s27, 1
      %p448 = scmp.lt.s32.totalorder %s445, 15
      %s449 = scalar_select %p448, %s445, 15
      %s450 = smul.addr %s449, 2
      %s451 = smul.addr %s447, 32
      %s452 = sadd.s32 %s450, %s451
      %s453 = smul.addr %s452, 8
      %s454 = scalar_lea.vmem %s12, %s453
      %s455 = smul.u32 8, %s28
      %s456 = smul.u32 %s28, 8
      %s457 = smul.u32 %s456, 24
      %s458 = scalar_lea.vmem %s440, %s457
      %v459 = vld [vmem:[%s458] sm:$0xff]
      %v460 = vld [vmem:[%s458 + $0x8] sm:$0xff]
      %v461 = vld [vmem:[%s458 + $0x10] sm:$0xff]
      %v462 = vld [vmem:[%s458 + $0x18] sm:$0xff]
      %v463 = vld [vmem:[%s458 + $0x20] sm:$0xff]
      %v464 = vld [vmem:[%s458 + $0x28] sm:$0xff]
      %v465 = vld [vmem:[%s458 + $0x30] sm:$0xff]
      %v466 = vld [vmem:[%s458 + $0x38] sm:$0xff]
      %v467 = vld [vmem:[%s458 + $0x40] sm:$0xff]
      %v468 = vld [vmem:[%s458 + $0x48] sm:$0xff]
      %v469 = vld [vmem:[%s458 + $0x50] sm:$0xff]
      %v470 = vld [vmem:[%s458 + $0x58] sm:$0xff]
      %v471 = vld [vmem:[%s458 + $0x60] sm:$0xff]
      %v472 = vld [vmem:[%s458 + $0x68] sm:$0xff]
      %v473 = vld [vmem:[%s458 + $0x70] sm:$0xff]
      %v474 = vld [vmem:[%s458 + $0x78] sm:$0xff]
      %v475 = vld [vmem:[%s458 + $0x80] sm:$0xff]
      %v476 = vld [vmem:[%s458 + $0x88] sm:$0xff]
      %v477 = vld [vmem:[%s458 + $0x90] sm:$0xff]
      %v478 = vld [vmem:[%s458 + $0x98] sm:$0xff]
      %v479 = vld [vmem:[%s458 + $0xa0] sm:$0xff]
      %v480 = vld [vmem:[%s458 + $0xa8] sm:$0xff]
      %v481 = vld [vmem:[%s458 + $0xb0] sm:$0xff]
      %v482 = vld [vmem:[%s458 + $0xb8] sm:$0xff]
      %v483 = vld [vmem:[%s458 + $0xc0] sm:$0xff]
      %v484 = vld [vmem:[%s458 + $0xc8] sm:$0xff]
      %v485 = vld [vmem:[%s458 + $0xd0] sm:$0xff]
      %v486 = vld [vmem:[%s458 + $0xd8] sm:$0xff]
      %v487 = vld [vmem:[%s458 + $0xe0] sm:$0xff]
      %v488 = vld [vmem:[%s458 + $0xe8] sm:$0xff]
      %v489 = vld [vmem:[%s3] sm:$0xf]
      %vm490 = vcmask 31744
      %v492 = vsel %vm490, %v459, 0
      %v495 = vsel %vm490, %v460, 0
      %v498 = vsel %vm490, %v461, 0
      %v501 = vsel %vm490, %v462, 0
      %v504 = vsel %vm490, %v463, 0
      %v507 = vsel %vm490, %v464, 0
      %v510 = vsel %vm490, %v465, 0
      %v513 = vsel %vm490, %v466, 0
      %v516 = vsel %vm490, %v467, 0
      %v519 = vsel %vm490, %v468, 0
      %v522 = vsel %vm490, %v469, 0
      %v525 = vsel %vm490, %v470, 0
      %v528 = vsel %vm490, %v471, 0
      %v531 = vsel %vm490, %v472, 0
      %v534 = vsel %vm490, %v473, 0
      %v537 = vsel %vm490, %v474, 0
      %v540 = vsel %vm490, %v475, 0
      %v543 = vsel %vm490, %v476, 0
      %v546 = vsel %vm490, %v477, 0
      %v549 = vsel %vm490, %v478, 0
      %v552 = vsel %vm490, %v479, 0
      %v555 = vsel %vm490, %v480, 0
      %v558 = vsel %vm490, %v481, 0
      %v561 = vsel %vm490, %v482, 0
      %v564 = vsel %vm490, %v483, 0
      %v567 = vsel %vm490, %v484, 0
      %v570 = vsel %vm490, %v485, 0
      %v573 = vsel %vm490, %v486, 0
      %v576 = vsel %vm490, %v487, 0
      %v579 = vsel %vm490, %v488, 0
      %vm581 = vcmask 1043456
      %v583 = vsel %vm581, %v489, 0
      %585 = vmatprep.subr.mxu0 0.0
      %586 = vmatpush1.msra.mxu0 %v583
      %587 = vmatprep.subr.mxu0 0.0
      %588 = vmatpush1.msra.mxu0 0.0
      %589 = vmatprep.subr.mxu0 0.0
      %590 = vmatpush1.msra.mxu0 0.0
      %591 = vmatprep.subr.mxu0 0.0
      %592 = vmatpush1.msra.mxu0 0.0
      %593 = vmatprep.subr.mxu0 0.0
      %594 = vmatpush1.msra.mxu0 0.0
      %595 = vmatprep.subr.mxu0 0.0
      %596 = vmatpush1.msra.mxu0 0.0
      %597 = vmatprep.subr.mxu0 0.0
      %598 = vmatpush1.msra.mxu0 0.0
      %599 = vmatprep.subr.mxu0 0.0
      %600 = vmatpush1.msra.mxu0 0.0
      %601 = vmatprep.subr.mxu0 0.0
      %602 = vmatpush1.msra.mxu0 0.0
      %603 = vmatprep.subr.mxu0 0.0
      %604 = vmatpush1.msra.mxu0 0.0
      %605 = vmatprep.subr.mxu0 0.0
      %606 = vmatpush1.msra.mxu0 0.0
      %607 = vmatprep.subr.mxu0 0.0
      %608 = vmatpush1.msra.mxu0 0.0
      %609 = vmatprep.subr.mxu0 0.0
      %610 = vmatpush1.msra.mxu0 0.0
      %611 = vmatprep.subr.mxu0 0.0
      %612 = vmatpush1.msra.mxu0 0.0
      %613 = vmatprep.subr.mxu0 0.0
      %614 = vmatpush1.msra.mxu0 0.0
      %615 = vmatprep.subr.mxu0 0.0
      %616 = vmatpush1.msra.mxu0 0.0
      %617 = vmatprep.subr.mxu0 0.0
      %618 = vmatpush1.msra.mxu0 0.0
      %619 = vmatprep.subr.mxu0 0.0
      %620 = vmatpush1.msra.mxu0 0.0
      %621 = vmatprep.subr.mxu0 0.0
      %622 = vmatpush1.msra.mxu0 0.0
      %623 = vmatprep.subr.mxu0 0.0
      %624 = vmatpush1.msra.mxu0 0.0
      %625 = vmatprep.subr.mxu0 0.0
      %626 = vmatpush1.msra.mxu0 0.0
      %627 = vmatprep.subr.mxu0 0.0
      %628 = vmatpush1.msra.mxu0 0.0
      %629 = vmatprep.subr.mxu0 0.0
      %630 = vmatpush1.msra.mxu0 0.0
      %631 = vmatprep.subr.mxu0 0.0
      %632 = vmatpush1.msra.mxu0 0.0
      %633 = vmatprep.subr.mxu0 0.0
      %634 = vmatpush1.msra.mxu0 0.0
      %635 = vmatprep.subr.mxu0 0.0
      %636 = vmatpush1.msra.mxu0 0.0
      %637 = vmatprep.subr.mxu0 0.0
      %638 = vmatpush1.msra.mxu0 0.0
      %639 = vmatprep.subr.mxu0 0.0
      %640 = vmatpush1.msra.mxu0 0.0
      %641 = vmatprep.subr.mxu0 0.0
      %642 = vmatpush1.msra.mxu0 0.0
      %643 = vmatprep.subr.mxu0 0.0
      %644 = vmatpush1.msra.mxu0 0.0
      %645 = vmatprep.subr.mxu0 0.0
      %646 = vmatpush1.msra.mxu0 0.0
      %647 = vmatprep.subr.mxu0 0.0
      %648 = vmatpush1.msra.mxu0 0.0
      %649 = vmatprep.mubr.f32.mxu0 0.0
      %650 = vmatmul.mubr.f32.gmra.mrb[0].mxu0 %v492
      %v651 = vpop.f32.mrb[0].mxu0
      %v652 = vadd.f32 0.0, %v651
      %v653 = vpop.f32.mrb[0].mxu0
      %654 = vmatprep.mubr.f32.mxu0 0.0
      %655 = vmatmul.mubr.f32.gmra.mrb[0].mxu0 %v495
      %v656 = vpop.f32.mrb[0].mxu0
      %v657 = vadd.f32 0.0, %v656
      %v658 = vpop.f32.mrb[0].mxu0
      %659 = vmatprep.mubr.f32.mxu0 0.0
      %660 = vmatmul.mubr.f32.gmra.mrb[0].mxu0 %v498
      %v661 = vpop.f32.mrb[0].mxu0
      %v662 = vadd.f32 0.0, %v661
      %v663 = vpop.f32.mrb[0].mxu0
      %664 = vmatprep.mubr.f32.mxu0 0.0
      %665 = vmatmul.mubr.f32.gmra.mrb[0].mxu0 %v501
      %v666 = vpop.f32.mrb[0].mxu0
      %v667 = vadd.f32 0.0, %v666
      %v668 = vpop.f32.mrb[0].mxu0
      %669 = vmatprep.mubr.f32.mxu0 0.0
      %670 = vmatmul.mubr.f32.gmra.mrb[0].mxu0 %v504
      %v671 = vpop.f32.mrb[0].mxu0
      %v672 = vadd.f32 0.0, %v671
      %v673 = vpop.f32.mrb[0].mxu0
      %674 = vmatprep.mubr.f32.mxu0 0.0
      %675 = vmatmul.mubr.f32.gmra.mrb[0].mxu0 %v507
      %v676 = vpop.f32.mrb[0].mxu0
      %v677 = vadd.f32 0.0, %v676
      %v678 = vpop.f32.mrb[0].mxu0
      %679 = vmatprep.mubr.f32.mxu0 0.0
      %680 = vmatmul.mubr.f32.gmra.mrb[0].mxu0 %v510
      %v681 = vpop.f32.mrb[0].mxu0
      %v682 = vadd.f32 0.0, %v681
      %v683 = vpop.f32.mrb[0].mxu0
      %684 = vmatprep.mubr.f32.mxu0 0.0
      %685 = vmatmul.mubr.f32.gmra.mrb[0].mxu0 %v513
      %v686 = vpop.f32.mrb[0].mxu0
      %v687 = vadd.f32 0.0, %v686
      %v688 = vpop.f32.mrb[0].mxu0
      %689 = vmatprep.mubr.f32.mxu0 0.0
      %690 = vmatmul.mubr.f32.gmra.mrb[0].mxu0 %v516
      %v691 = vpop.f32.mrb[0].mxu0
      %v692 = vadd.f32 0.0, %v691
      %v693 = vpop.f32.mrb[0].mxu0
      %694 = vmatprep.mubr.f32.mxu0 0.0
      %695 = vmatmul.mubr.f32.gmra.mrb[0].mxu0 %v519
      %v696 = vpop.f32.mrb[0].mxu0
      %v697 = vadd.f32 0.0, %v696
      %v698 = vpop.f32.mrb[0].mxu0
      %699 = vmatprep.mubr.f32.mxu0 0.0
      %700 = vmatmul.mubr.f32.gmra.mrb[0].mxu0 %v522
      %v701 = vpop.f32.mrb[0].mxu0
      %v702 = vadd.f32 0.0, %v701
      %v703 = vpop.f32.mrb[0].mxu0
      %704 = vmatprep.mubr.f32.mxu0 0.0
      %705 = vmatmul.mubr.f32.gmra.mrb[0].mxu0 %v525
      %v706 = vpop.f32.mrb[0].mxu0
      %v707 = vadd.f32 0.0, %v706
      %v708 = vpop.f32.mrb[0].mxu0
      %709 = vmatprep.mubr.f32.mxu0 0.0
      %710 = vmatmul.mubr.f32.gmra.mrb[0].mxu0 %v528
      %v711 = vpop.f32.mrb[0].mxu0
      %v712 = vadd.f32 0.0, %v711
      %v713 = vpop.f32.mrb[0].mxu0
      %714 = vmatprep.mubr.f32.mxu0 0.0
      %715 = vmatmul.mubr.f32.gmra.mrb[0].mxu0 %v531
      %v716 = vpop.f32.mrb[0].mxu0
      %v717 = vadd.f32 0.0, %v716
      %v718 = vpop.f32.mrb[0].mxu0
      %719 = vmatprep.mubr.f32.mxu0 0.0
      %720 = vmatmul.mubr.f32.gmra.mrb[0].mxu0 %v534
      %v721 = vpop.f32.mrb[0].mxu0
      %v722 = vadd.f32 0.0, %v721
      %v723 = vpop.f32.mrb[0].mxu0
      %724 = vmatprep.mubr.f32.mxu0 0.0
      %725 = vmatmul.mubr.f32.gmra.mrb[0].mxu0 %v537
      %v726 = vpop.f32.mrb[0].mxu0
      %v727 = vadd.f32 0.0, %v726
      %v728 = vpop.f32.mrb[0].mxu0
      %729 = vmatprep.mubr.f32.mxu0 0.0
      %730 = vmatmul.mubr.f32.gmra.mrb[0].mxu0 %v540
      %v731 = vpop.f32.mrb[0].mxu0
      %v732 = vadd.f32 0.0, %v731
      %v733 = vpop.f32.mrb[0].mxu0
      %734 = vmatprep.mubr.f32.mxu0 0.0
      %735 = vmatmul.mubr.f32.gmra.mrb[0].mxu0 %v543
      %v736 = vpop.f32.mrb[0].mxu0
      %v737 = vadd.f32 0.0, %v736
      %v738 = vpop.f32.mrb[0].mxu0
      %739 = vmatprep.mubr.f32.mxu0 0.0
      %740 = vmatmul.mubr.f32.gmra.mrb[0].mxu0 %v546
      %v741 = vpop.f32.mrb[0].mxu0
      %v742 = vadd.f32 0.0, %v741
      %v743 = vpop.f32.mrb[0].mxu0
      %744 = vmatprep.mubr.f32.mxu0 0.0
      %745 = vmatmul.mubr.f32.gmra.mrb[0].mxu0 %v549
      %v746 = vpop.f32.mrb[0].mxu0
      %v747 = vadd.f32 0.0, %v746
      %v748 = vpop.f32.mrb[0].mxu0
      %749 = vmatprep.mubr.f32.mxu0 0.0
      %750 = vmatmul.mubr.f32.gmra.mrb[0].mxu0 %v552
      %v751 = vpop.f32.mrb[0].mxu0
      %v752 = vadd.f32 0.0, %v751
      %v753 = vpop.f32.mrb[0].mxu0
      %754 = vmatprep.mubr.f32.mxu0 0.0
      %755 = vmatmul.mubr.f32.gmra.mrb[0].mxu0 %v555
      %v756 = vpop.f32.mrb[0].mxu0
      %v757 = vadd.f32 0.0, %v756
      %v758 = vpop.f32.mrb[0].mxu0
      %759 = vmatprep.mubr.f32.mxu0 0.0
      %760 = vmatmul.mubr.f32.gmra.mrb[0].mxu0 %v558
      %v761 = vpop.f32.mrb[0].mxu0
      %v762 = vadd.f32 0.0, %v761
      %v763 = vpop.f32.mrb[0].mxu0
      %764 = vmatprep.mubr.f32.mxu0 0.0
      %765 = vmatmul.mubr.f32.gmra.mrb[0].mxu0 %v561
      %v766 = vpop.f32.mrb[0].mxu0
      %v767 = vadd.f32 0.0, %v766
      %v768 = vpop.f32.mrb[0].mxu0
      %769 = vmatprep.mubr.f32.mxu0 0.0
      %770 = vmatmul.mubr.f32.gmra.mrb[0].mxu0 %v564
      %v771 = vpop.f32.mrb[0].mxu0
      %v772 = vadd.f32 0.0, %v771
      %v773 = vpop.f32.mrb[0].mxu0
      %774 = vmatprep.mubr.f32.mxu0 0.0
      %775 = vmatmul.mubr.f32.gmra.mrb[0].mxu0 %v567
      %v776 = vpop.f32.mrb[0].mxu0
      %v777 = vadd.f32 0.0, %v776
      %v778 = vpop.f32.mrb[0].mxu0
      %779 = vmatprep.mubr.f32.mxu0 0.0
      %780 = vmatmul.mubr.f32.gmra.mrb[0].mxu0 %v570
      %v781 = vpop.f32.mrb[0].mxu0
      %v782 = vadd.f32 0.0, %v781
      %v783 = vpop.f32.mrb[0].mxu0
      %784 = vmatprep.mubr.f32.mxu0 0.0
      %785 = vmatmul.mubr.f32.gmra.mrb[0].mxu0 %v573
      %v786 = vpop.f32.mrb[0].mxu0
      %v787 = vadd.f32 0.0, %v786
      %v788 = vpop.f32.mrb[0].mxu0
      %789 = vmatprep.mubr.f32.mxu0 0.0
      %790 = vmatmul.mubr.f32.gmra.mrb[0].mxu0 %v576
      %v791 = vpop.f32.mrb[0].mxu0
      %v792 = vadd.f32 0.0, %v791
      %v793 = vpop.f32.mrb[0].mxu0
      %794 = vmatprep.mubr.f32.mxu0 0.0
      %795 = vmatmul.mubr.f32.gmra.mrb[0].mxu0 %v579
      %v796 = vpop.f32.mrb[0].mxu0
      %v797 = vadd.f32 0.0, %v796
      %v798 = vpop.f32.mrb[0].mxu0
      %799 = vdwg.mxu0
      %v800 = vld [vmem:[%s4] sm:$0x1]
      %v802 = vlaneseq
      %v803 = vshrl.u32 %v802, 7
      %v804 = vsub.s32 0, %v803
      %v805 = vrot.slane %v800, %v804
      %v807 = vmul.f32 %v652, %v805
      %v808 = vmul.f32 %v657, %v805
      %v809 = vmul.f32 %v662, %v805
      %v810 = vmul.f32 %v667, %v805
      %v811 = vmul.f32 %v672, %v805
      %v812 = vmul.f32 %v677, %v805
      %v813 = vmul.f32 %v682, %v805
      %v814 = vmul.f32 %v687, %v805
      %v815 = vmul.f32 %v692, %v805
      %v816 = vmul.f32 %v697, %v805
      %v817 = vmul.f32 %v702, %v805
      %v818 = vmul.f32 %v707, %v805
      %v819 = vmul.f32 %v712, %v805
      %v820 = vmul.f32 %v717, %v805
      %v821 = vmul.f32 %v722, %v805
      %v822 = vmul.f32 %v727, %v805
      %v823 = vmul.f32 %v732, %v805
      %v824 = vmul.f32 %v737, %v805
      %v825 = vmul.f32 %v742, %v805
      %v826 = vmul.f32 %v747, %v805
      %v827 = vmul.f32 %v752, %v805
      %v828 = vmul.f32 %v757, %v805
      %v829 = vmul.f32 %v762, %v805
      %v830 = vmul.f32 %v767, %v805
      %v831 = vmul.f32 %v772, %v805
      %v832 = vmul.f32 %v777, %v805
      %v833 = vmul.f32 %v782, %v805
      %v834 = vmul.f32 %v787, %v805
      %v835 = vmul.f32 %v792, %v805
      %v836 = vmul.f32 %v797, %v805
      %v837 = vld [vmem:[%s5] sm:$0x1]
      %v839 = vlaneseq
      %v840 = vshrl.u32 %v839, 7
      %v841 = vsub.s32 0, %v840
      %v842 = vrot.slane %v837, %v841
      %v844 = vadd.f32 %v807, %v842
      %v845 = vadd.f32 %v808, %v842
      %v846 = vadd.f32 %v809, %v842
      %v847 = vadd.f32 %v810, %v842
      %v848 = vadd.f32 %v811, %v842
      %v849 = vadd.f32 %v812, %v842
      %v850 = vadd.f32 %v813, %v842
      %v851 = vadd.f32 %v814, %v842
      %v852 = vadd.f32 %v815, %v842
      %v853 = vadd.f32 %v816, %v842
      %v854 = vadd.f32 %v817, %v842
      %v855 = vadd.f32 %v818, %v842
      %v856 = vadd.f32 %v819, %v842
      %v857 = vadd.f32 %v820, %v842
      %v858 = vadd.f32 %v821, %v842
      %v859 = vadd.f32 %v822, %v842
      %v860 = vadd.f32 %v823, %v842
      %v861 = vadd.f32 %v824, %v842
      %v862 = vadd.f32 %v825, %v842
      %v863 = vadd.f32 %v826, %v842
      %v864 = vadd.f32 %v827, %v842
      %v865 = vadd.f32 %v828, %v842
      %v866 = vadd.f32 %v829, %v842
      %v867 = vadd.f32 %v830, %v842
      %v868 = vadd.f32 %v831, %v842
      %v869 = vadd.f32 %v832, %v842
      %v870 = vadd.f32 %v833, %v842
      %v871 = vadd.f32 %v834, %v842
      %v872 = vadd.f32 %v835, %v842
      %v873 = vadd.f32 %v836, %v842
      %v874 = vmax.f32 %v844, 0.0
      %v875 = vmax.f32 %v845, 0.0
      %v876 = vmax.f32 %v846, 0.0
      %v877 = vmax.f32 %v847, 0.0
      %v878 = vmax.f32 %v848, 0.0
      %v879 = vmax.f32 %v849, 0.0
      %v880 = vmax.f32 %v850, 0.0
      %v881 = vmax.f32 %v851, 0.0
      %v882 = vmax.f32 %v852, 0.0
      %v883 = vmax.f32 %v853, 0.0
      %v884 = vmax.f32 %v854, 0.0
      %v885 = vmax.f32 %v855, 0.0
      %v886 = vmax.f32 %v856, 0.0
      %v887 = vmax.f32 %v857, 0.0
      %v888 = vmax.f32 %v858, 0.0
      %v889 = vmax.f32 %v859, 0.0
      %v890 = vmax.f32 %v860, 0.0
      %v891 = vmax.f32 %v861, 0.0
      %v892 = vmax.f32 %v862, 0.0
      %v893 = vmax.f32 %v863, 0.0
      %v894 = vmax.f32 %v864, 0.0
      %v895 = vmax.f32 %v865, 0.0
      %v896 = vmax.f32 %v866, 0.0
      %v897 = vmax.f32 %v867, 0.0
      %v898 = vmax.f32 %v868, 0.0
      %v899 = vmax.f32 %v869, 0.0
      %v900 = vmax.f32 %v870, 0.0
      %v901 = vmax.f32 %v871, 0.0
      %v902 = vmax.f32 %v872, 0.0
      %v903 = vmax.f32 %v873, 0.0
      %v904 = vmin.f32 %v874, 6.0
      %v905 = vmin.f32 %v875, 6.0
      %v906 = vmin.f32 %v876, 6.0
      %v907 = vmin.f32 %v877, 6.0
      %v908 = vmin.f32 %v878, 6.0
      %v909 = vmin.f32 %v879, 6.0
      %v910 = vmin.f32 %v880, 6.0
      %v911 = vmin.f32 %v881, 6.0
      %v912 = vmin.f32 %v882, 6.0
      %v913 = vmin.f32 %v883, 6.0
      %v914 = vmin.f32 %v884, 6.0
      %v915 = vmin.f32 %v885, 6.0
      %v916 = vmin.f32 %v886, 6.0
      %v917 = vmin.f32 %v887, 6.0
      %v918 = vmin.f32 %v888, 6.0
      %v919 = vmin.f32 %v889, 6.0
      %v920 = vmin.f32 %v890, 6.0
      %v921 = vmin.f32 %v891, 6.0
      %v922 = vmin.f32 %v892, 6.0
      %v923 = vmin.f32 %v893, 6.0
      %v924 = vmin.f32 %v894, 6.0
      %v925 = vmin.f32 %v895, 6.0
      %v926 = vmin.f32 %v896, 6.0
      %v927 = vmin.f32 %v897, 6.0
      %v928 = vmin.f32 %v898, 6.0
      %v929 = vmin.f32 %v899, 6.0
      %v930 = vmin.f32 %v900, 6.0
      %v931 = vmin.f32 %v901, 6.0
      %v932 = vmin.f32 %v902, 6.0
      %v933 = vmin.f32 %v903, 6.0
      %v934 = vld [vmem:[%s444] sm:$0x1]
      %v935 = vld [vmem:[%s444 + $0x1] sm:$0x1]
      %v936 = vld [vmem:[%s444 + $0x2] sm:$0x1]
      %v937 = vld [vmem:[%s444 + $0x3] sm:$0x1]
      %v938 = vld [vmem:[%s444 + $0x4] sm:$0x1]
      %v939 = vld [vmem:[%s444 + $0x5] sm:$0x1]
      %v940 = vld [vmem:[%s444 + $0x6] sm:$0x1]
      %v941 = vld [vmem:[%s444 + $0x7] sm:$0x1]
      %v942 = vld [vmem:[%s444 + $0x8] sm:$0x1]
      %v943 = vld [vmem:[%s444 + $0x9] sm:$0x1]
      %v954 = vlaneseq
      %v955 = vshrl.u32 %v954, 7
      %v956 = vsub.s32 0, %v955
      %v957 = vrot.slane %v934, %v956
      %v958 = vlaneseq
      %v959 = vshrl.u32 %v958, 7
      %v960 = vsub.s32 0, %v959
      %v961 = vrot.slane %v935, %v960
      %v962 = vlaneseq
      %v963 = vshrl.u32 %v962, 7
      %v964 = vsub.s32 0, %v963
      %v965 = vrot.slane %v936, %v964
      %v966 = vlaneseq
      %v967 = vshrl.u32 %v966, 7
      %v968 = vsub.s32 0, %v967
      %v969 = vrot.slane %v937, %v968
      %v970 = vlaneseq
      %v971 = vshrl.u32 %v970, 7
      %v972 = vsub.s32 0, %v971
      %v973 = vrot.slane %v938, %v972
      %v974 = vlaneseq
      %v975 = vshrl.u32 %v974, 7
      %v976 = vsub.s32 0, %v975
      %v977 = vrot.slane %v939, %v976
      %v978 = vlaneseq
      %v979 = vshrl.u32 %v978, 7
      %v980 = vsub.s32 0, %v979
      %v981 = vrot.slane %v940, %v980
      %v982 = vlaneseq
      %v983 = vshrl.u32 %v982, 7
      %v984 = vsub.s32 0, %v983
      %v985 = vrot.slane %v941, %v984
      %v986 = vlaneseq
      %v987 = vshrl.u32 %v986, 7
      %v988 = vsub.s32 0, %v987
      %v989 = vrot.slane %v942, %v988
      %v990 = vlaneseq
      %v991 = vshrl.u32 %v990, 7
      %v992 = vsub.s32 0, %v991
      %v993 = vrot.slane %v943, %v992
      %v1004 = vmul.f32 %v904, %v957
      %v1005 = vmul.f32 %v905, %v957
      %v1006 = vmul.f32 %v906, %v957
      %v1007 = vmul.f32 %v907, %v961
      %v1008 = vmul.f32 %v908, %v961
      %v1009 = vmul.f32 %v909, %v961
      %v1010 = vmul.f32 %v910, %v965
      %v1011 = vmul.f32 %v911, %v965
      %v1012 = vmul.f32 %v912, %v965
      %v1013 = vmul.f32 %v913, %v969
      %v1014 = vmul.f32 %v914, %v969
      %v1015 = vmul.f32 %v915, %v969
      %v1016 = vmul.f32 %v916, %v973
      %v1017 = vmul.f32 %v917, %v973
      %v1018 = vmul.f32 %v918, %v973
      %v1019 = vmul.f32 %v919, %v977
      %v1020 = vmul.f32 %v920, %v977
      %v1021 = vmul.f32 %v921, %v977
      %v1022 = vmul.f32 %v922, %v981
      %v1023 = vmul.f32 %v923, %v981
      %v1024 = vmul.f32 %v924, %v981
      %v1025 = vmul.f32 %v925, %v985
      %v1026 = vmul.f32 %v926, %v985
      %v1027 = vmul.f32 %v927, %v985
      %v1028 = vmul.f32 %v928, %v989
      %v1029 = vmul.f32 %v929, %v989
      %v1030 = vmul.f32 %v930, %v989
      %v1031 = vmul.f32 %v931, %v993
      %v1032 = vmul.f32 %v932, %v993
      %v1033 = vmul.f32 %v933, %v993
      %v1034 = vld [vmem:[%s2] sm:$0xff]
      %v1035 = vld [vmem:[%s2 + $0x8] sm:$0xff]
      %v1036 = vld [vmem:[%s2 + $0x10] sm:$0xff]
      %v1037 = vmul.f32 %v1004, %v1034
      %v1038 = vmul.f32 %v1005, %v1035
      %v1039 = vmul.f32 %v1006, %v1036
      %v1040 = vmul.f32 %v1007, %v1034
      %v1041 = vmul.f32 %v1008, %v1035
      %v1042 = vmul.f32 %v1009, %v1036
      %v1043 = vmul.f32 %v1010, %v1034
      %v1044 = vmul.f32 %v1011, %v1035
      %v1045 = vmul.f32 %v1012, %v1036
      %v1046 = vmul.f32 %v1013, %v1034
      %v1047 = vmul.f32 %v1014, %v1035
      %v1048 = vmul.f32 %v1015, %v1036
      %v1049 = vmul.f32 %v1016, %v1034
      %v1050 = vmul.f32 %v1017, %v1035
      %v1051 = vmul.f32 %v1018, %v1036
      %v1052 = vmul.f32 %v1019, %v1034
      %v1053 = vmul.f32 %v1020, %v1035
      %v1054 = vmul.f32 %v1021, %v1036
      %v1055 = vmul.f32 %v1022, %v1034
      %v1056 = vmul.f32 %v1023, %v1035
      %v1057 = vmul.f32 %v1024, %v1036
      %v1058 = vmul.f32 %v1025, %v1034
      %v1059 = vmul.f32 %v1026, %v1035
      %v1060 = vmul.f32 %v1027, %v1036
      %v1061 = vmul.f32 %v1028, %v1034
      %v1062 = vmul.f32 %v1029, %v1035
      %v1063 = vmul.f32 %v1030, %v1036
      %v1064 = vmul.f32 %v1031, %v1034
      %v1065 = vmul.f32 %v1032, %v1035
      %v1066 = vmul.f32 %v1033, %v1036
      %v1067 = vld [vmem:[%s6] sm:$0x1]
      %v1068 = vlaneseq
      %v1069 = vshrl.u32 %v1068, 7
      %v1070 = vsub.s32 0, %v1069
      %v1071 = vrot.slane %v1067, %v1070
      %v1072 = vmul.f32 %v1037, %v1071
      %v1073 = vmul.f32 %v1038, %v1071
      %v1074 = vmul.f32 %v1040, %v1071
      %v1075 = vmul.f32 %v1041, %v1071
      %v1076 = vmul.f32 %v1043, %v1071
      %v1077 = vmul.f32 %v1044, %v1071
      %v1078 = vmul.f32 %v1046, %v1071
      %v1079 = vmul.f32 %v1047, %v1071
      %v1080 = vmul.f32 %v1049, %v1071
      %v1081 = vmul.f32 %v1050, %v1071
      %v1082 = vmul.f32 %v1052, %v1071
      %v1083 = vmul.f32 %v1053, %v1071
      %v1084 = vmul.f32 %v1055, %v1071
      %v1085 = vmul.f32 %v1056, %v1071
      %v1086 = vmul.f32 %v1058, %v1071
      %v1087 = vmul.f32 %v1059, %v1071
      %v1088 = vadd.f32 %v1072, 0.0
      %v1089 = vadd.f32 %v1073, 0.0
      %v1090 = vadd.f32 %v1074, 0.0
      %v1091 = vadd.f32 %v1075, 0.0
      %v1092 = vadd.f32 %v1076, 0.0
      %v1093 = vadd.f32 %v1077, 0.0
      %v1094 = vadd.f32 %v1078, 0.0
      %v1095 = vadd.f32 %v1079, 0.0
      %v1096 = vadd.f32 %v1080, 0.0
      %v1097 = vadd.f32 %v1081, 0.0
      %v1098 = vadd.f32 %v1082, 0.0
      %v1099 = vadd.f32 %v1083, 0.0
      %v1100 = vadd.f32 %v1084, 0.0
      %v1101 = vadd.f32 %v1085, 0.0
      %v1102 = vadd.f32 %v1086, 0.0
      %v1103 = vadd.f32 %v1087, 0.0
      %v1104 = vld [vmem:[%s6 + $0x1] sm:$0x1]
      %v1105 = vlaneseq
      %v1106 = vshrl.u32 %v1105, 7
      %v1107 = vsub.s32 0, %v1106
      %v1108 = vrot.slane %v1104, %v1107
      %v1109 = vmul.f32 %v1037, %v1108
      %v1110 = vmul.f32 %v1038, %v1108
      %v1111 = vmul.f32 %v1039, %v1108
      %v1112 = vmul.f32 %v1040, %v1108
      %v1113 = vmul.f32 %v1041, %v1108
      %v1114 = vmul.f32 %v1042, %v1108
      %v1115 = vmul.f32 %v1043, %v1108
      %v1116 = vmul.f32 %v1044, %v1108
      %v1117 = vmul.f32 %v1045, %v1108
      %v1118 = vmul.f32 %v1046, %v1108
      %v1119 = vmul.f32 %v1047, %v1108
      %v1120 = vmul.f32 %v1048, %v1108
      %v1121 = vmul.f32 %v1049, %v1108
      %v1122 = vmul.f32 %v1050, %v1108
      %v1123 = vmul.f32 %v1051, %v1108
      %v1124 = vmul.f32 %v1052, %v1108
      %v1125 = vmul.f32 %v1053, %v1108
      %v1126 = vmul.f32 %v1054, %v1108
      %v1127 = vmul.f32 %v1055, %v1108
      %v1128 = vmul.f32 %v1056, %v1108
      %v1129 = vmul.f32 %v1057, %v1108
      %v1130 = vmul.f32 %v1058, %v1108
      %v1131 = vmul.f32 %v1059, %v1108
      %v1132 = vmul.f32 %v1060, %v1108
      %vm1157 = vcmask 1046528
      %v1158 = vrot.slane %v1109, 1
      %v1159 = vrot.slane %v1110, 1
      %v1160 = vsel %vm1157, %v1158, %v1159
      %v1161 = vrot.slane %v1111, 1
      %v1162 = vsel %vm1157, %v1159, %v1161
      %v1163 = vrot.slane %v1112, 1
      %v1164 = vrot.slane %v1113, 1
      %v1165 = vsel %vm1157, %v1163, %v1164
      %v1166 = vrot.slane %v1114, 1
      %v1167 = vsel %vm1157, %v1164, %v1166
      %v1168 = vrot.slane %v1115, 1
      %v1169 = vrot.slane %v1116, 1
      %v1170 = vsel %vm1157, %v1168, %v1169
      %v1171 = vrot.slane %v1117, 1
      %v1172 = vsel %vm1157, %v1169, %v1171
      %v1173 = vrot.slane %v1118, 1
      %v1174 = vrot.slane %v1119, 1
      %v1175 = vsel %vm1157, %v1173, %v1174
      %v1176 = vrot.slane %v1120, 1
      %v1177 = vsel %vm1157, %v1174, %v1176
      %v1178 = vrot.slane %v1121, 1
      %v1179 = vrot.slane %v1122, 1
      %v1180 = vsel %vm1157, %v1178, %v1179
      %v1181 = vrot.slane %v1123, 1
      %v1182 = vsel %vm1157, %v1179, %v1181
      %v1183 = vrot.slane %v1124, 1
      %v1184 = vrot.slane %v1125, 1
      %v1185 = vsel %vm1157, %v1183, %v1184
      %v1186 = vrot.slane %v1126, 1
      %v1187 = vsel %vm1157, %v1184, %v1186
      %v1188 = vrot.slane %v1127, 1
      %v1189 = vrot.slane %v1128, 1
      %v1190 = vsel %vm1157, %v1188, %v1189
      %v1191 = vrot.slane %v1129, 1
      %v1192 = vsel %vm1157, %v1189, %v1191
      %v1193 = vrot.slane %v1130, 1
      %v1194 = vrot.slane %v1131, 1
      %v1195 = vsel %vm1157, %v1193, %v1194
      %v1196 = vrot.slane %v1132, 1
      %v1197 = vsel %vm1157, %v1194, %v1196
      %v1214 = vadd.f32 %v1088, %v1160
      %v1215 = vadd.f32 %v1089, %v1162
      %v1216 = vadd.f32 %v1090, %v1165
      %v1217 = vadd.f32 %v1091, %v1167
      %v1218 = vadd.f32 %v1092, %v1170
      %v1219 = vadd.f32 %v1093, %v1172
      %v1220 = vadd.f32 %v1094, %v1175
      %v1221 = vadd.f32 %v1095, %v1177
      %v1222 = vadd.f32 %v1096, %v1180
      %v1223 = vadd.f32 %v1097, %v1182
      %v1224 = vadd.f32 %v1098, %v1185
      %v1225 = vadd.f32 %v1099, %v1187
      %v1226 = vadd.f32 %v1100, %v1190
      %v1227 = vadd.f32 %v1101, %v1192
      %v1228 = vadd.f32 %v1102, %v1195
      %v1229 = vadd.f32 %v1103, %v1197
      %v1230 = vld [vmem:[%s6 + $0x2] sm:$0x1]
      %v1231 = vlaneseq
      %v1232 = vshrl.u32 %v1231, 7
      %v1233 = vsub.s32 0, %v1232
      %v1234 = vrot.slane %v1230, %v1233
      %v1235 = vmul.f32 %v1037, %v1234
      %v1236 = vmul.f32 %v1038, %v1234
      %v1237 = vmul.f32 %v1039, %v1234
      %v1238 = vmul.f32 %v1040, %v1234
      %v1239 = vmul.f32 %v1041, %v1234
      %v1240 = vmul.f32 %v1042, %v1234
      %v1241 = vmul.f32 %v1043, %v1234
      %v1242 = vmul.f32 %v1044, %v1234
      %v1243 = vmul.f32 %v1045, %v1234
      %v1244 = vmul.f32 %v1046, %v1234
      %v1245 = vmul.f32 %v1047, %v1234
      %v1246 = vmul.f32 %v1048, %v1234
      %v1247 = vmul.f32 %v1049, %v1234
      %v1248 = vmul.f32 %v1050, %v1234
      %v1249 = vmul.f32 %v1051, %v1234
      %v1250 = vmul.f32 %v1052, %v1234
      %v1251 = vmul.f32 %v1053, %v1234
      %v1252 = vmul.f32 %v1054, %v1234
      %v1253 = vmul.f32 %v1055, %v1234
      %v1254 = vmul.f32 %v1056, %v1234
      %v1255 = vmul.f32 %v1057, %v1234
      %v1256 = vmul.f32 %v1058, %v1234
      %v1257 = vmul.f32 %v1059, %v1234
      %v1258 = vmul.f32 %v1060, %v1234
      %vm1283 = vcmask 1045504
      %v1284 = vrot.slane %v1235, 2
      %v1285 = vrot.slane %v1236, 2
      %v1286 = vsel %vm1283, %v1284, %v1285
      %v1287 = vrot.slane %v1237, 2
      %v1288 = vsel %vm1283, %v1285, %v1287
      %v1289 = vrot.slane %v1238, 2
      %v1290 = vrot.slane %v1239, 2
      %v1291 = vsel %vm1283, %v1289, %v1290
      %v1292 = vrot.slane %v1240, 2
      %v1293 = vsel %vm1283, %v1290, %v1292
      %v1294 = vrot.slane %v1241, 2
      %v1295 = vrot.slane %v1242, 2
      %v1296 = vsel %vm1283, %v1294, %v1295
      %v1297 = vrot.slane %v1243, 2
      %v1298 = vsel %vm1283, %v1295, %v1297
      %v1299 = vrot.slane %v1244, 2
      %v1300 = vrot.slane %v1245, 2
      %v1301 = vsel %vm1283, %v1299, %v1300
      %v1302 = vrot.slane %v1246, 2
      %v1303 = vsel %vm1283, %v1300, %v1302
      %v1304 = vrot.slane %v1247, 2
      %v1305 = vrot.slane %v1248, 2
      %v1306 = vsel %vm1283, %v1304, %v1305
      %v1307 = vrot.slane %v1249, 2
      %v1308 = vsel %vm1283, %v1305, %v1307
      %v1309 = vrot.slane %v1250, 2
      %v1310 = vrot.slane %v1251, 2
      %v1311 = vsel %vm1283, %v1309, %v1310
      %v1312 = vrot.slane %v1252, 2
      %v1313 = vsel %vm1283, %v1310, %v1312
      %v1314 = vrot.slane %v1253, 2
      %v1315 = vrot.slane %v1254, 2
      %v1316 = vsel %vm1283, %v1314, %v1315
      %v1317 = vrot.slane %v1255, 2
      %v1318 = vsel %vm1283, %v1315, %v1317
      %v1319 = vrot.slane %v1256, 2
      %v1320 = vrot.slane %v1257, 2
      %v1321 = vsel %vm1283, %v1319, %v1320
      %v1322 = vrot.slane %v1258, 2
      %v1323 = vsel %vm1283, %v1320, %v1322
      %v1340 = vadd.f32 %v1214, %v1286
      %v1341 = vadd.f32 %v1215, %v1288
      %v1342 = vadd.f32 %v1216, %v1291
      %v1343 = vadd.f32 %v1217, %v1293
      %v1344 = vadd.f32 %v1218, %v1296
      %v1345 = vadd.f32 %v1219, %v1298
      %v1346 = vadd.f32 %v1220, %v1301
      %v1347 = vadd.f32 %v1221, %v1303
      %v1348 = vadd.f32 %v1222, %v1306
      %v1349 = vadd.f32 %v1223, %v1308
      %v1350 = vadd.f32 %v1224, %v1311
      %v1351 = vadd.f32 %v1225, %v1313
      %v1352 = vadd.f32 %v1226, %v1316
      %v1353 = vadd.f32 %v1227, %v1318
      %v1354 = vadd.f32 %v1228, %v1321
      %v1355 = vadd.f32 %v1229, %v1323
      %v1356 = vld [vmem:[%s6 + $0x3] sm:$0x1]
      %v1357 = vlaneseq
      %v1358 = vshrl.u32 %v1357, 7
      %v1359 = vsub.s32 0, %v1358
      %v1360 = vrot.slane %v1356, %v1359
      %v1361 = vmul.f32 %v1040, %v1360
      %v1362 = vmul.f32 %v1041, %v1360
      %v1363 = vmul.f32 %v1043, %v1360
      %v1364 = vmul.f32 %v1044, %v1360
      %v1365 = vmul.f32 %v1046, %v1360
      %v1366 = vmul.f32 %v1047, %v1360
      %v1367 = vmul.f32 %v1049, %v1360
      %v1368 = vmul.f32 %v1050, %v1360
      %v1369 = vmul.f32 %v1052, %v1360
      %v1370 = vmul.f32 %v1053, %v1360
      %v1371 = vmul.f32 %v1055, %v1360
      %v1372 = vmul.f32 %v1056, %v1360
      %v1373 = vmul.f32 %v1058, %v1360
      %v1374 = vmul.f32 %v1059, %v1360
      %v1375 = vmul.f32 %v1061, %v1360
      %v1376 = vmul.f32 %v1062, %v1360
      %v1377 = vadd.f32 %v1340, %v1361
      %v1378 = vadd.f32 %v1341, %v1362
      %v1379 = vadd.f32 %v1342, %v1363
      %v1380 = vadd.f32 %v1343, %v1364
      %v1381 = vadd.f32 %v1344, %v1365
      %v1382 = vadd.f32 %v1345, %v1366
      %v1383 = vadd.f32 %v1346, %v1367
      %v1384 = vadd.f32 %v1347, %v1368
      %v1385 = vadd.f32 %v1348, %v1369
      %v1386 = vadd.f32 %v1349, %v1370
      %v1387 = vadd.f32 %v1350, %v1371
      %v1388 = vadd.f32 %v1351, %v1372
      %v1389 = vadd.f32 %v1352, %v1373
      %v1390 = vadd.f32 %v1353, %v1374
      %v1391 = vadd.f32 %v1354, %v1375
      %v1392 = vadd.f32 %v1355, %v1376
      %v1393 = vld [vmem:[%s6 + $0x4] sm:$0x1]
      %v1394 = vlaneseq
      %v1395 = vshrl.u32 %v1394, 7
      %v1396 = vsub.s32 0, %v1395
      %v1397 = vrot.slane %v1393, %v1396
      %v1398 = vmul.f32 %v1040, %v1397
      %v1399 = vmul.f32 %v1041, %v1397
      %v1400 = vmul.f32 %v1042, %v1397
      %v1401 = vmul.f32 %v1043, %v1397
      %v1402 = vmul.f32 %v1044, %v1397
      %v1403 = vmul.f32 %v1045, %v1397
      %v1404 = vmul.f32 %v1046, %v1397
      %v1405 = vmul.f32 %v1047, %v1397
      %v1406 = vmul.f32 %v1048, %v1397
      %v1407 = vmul.f32 %v1049, %v1397
      %v1408 = vmul.f32 %v1050, %v1397
      %v1409 = vmul.f32 %v1051, %v1397
      %v1410 = vmul.f32 %v1052, %v1397
      %v1411 = vmul.f32 %v1053, %v1397
      %v1412 = vmul.f32 %v1054, %v1397
      %v1413 = vmul.f32 %v1055, %v1397
      %v1414 = vmul.f32 %v1056, %v1397
      %v1415 = vmul.f32 %v1057, %v1397
      %v1416 = vmul.f32 %v1058, %v1397
      %v1417 = vmul.f32 %v1059, %v1397
      %v1418 = vmul.f32 %v1060, %v1397
      %v1419 = vmul.f32 %v1061, %v1397
      %v1420 = vmul.f32 %v1062, %v1397
      %v1421 = vmul.f32 %v1063, %v1397
      %v1446 = vrot.slane %v1398, 1
      %v1447 = vrot.slane %v1399, 1
      %v1448 = vsel %vm1157, %v1446, %v1447
      %v1449 = vrot.slane %v1400, 1
      %v1450 = vsel %vm1157, %v1447, %v1449
      %v1451 = vrot.slane %v1401, 1
      %v1452 = vrot.slane %v1402, 1
      %v1453 = vsel %vm1157, %v1451, %v1452
      %v1454 = vrot.slane %v1403, 1
      %v1455 = vsel %vm1157, %v1452, %v1454
      %v1456 = vrot.slane %v1404, 1
      %v1457 = vrot.slane %v1405, 1
      %v1458 = vsel %vm1157, %v1456, %v1457
      %v1459 = vrot.slane %v1406, 1
      %v1460 = vsel %vm1157, %v1457, %v1459
      %v1461 = vrot.slane %v1407, 1
      %v1462 = vrot.slane %v1408, 1
      %v1463 = vsel %vm1157, %v1461, %v1462
      %v1464 = vrot.slane %v1409, 1
      %v1465 = vsel %vm1157, %v1462, %v1464
      %v1466 = vrot.slane %v1410, 1
      %v1467 = vrot.slane %v1411, 1
      %v1468 = vsel %vm1157, %v1466, %v1467
      %v1469 = vrot.slane %v1412, 1
      %v1470 = vsel %vm1157, %v1467, %v1469
      %v1471 = vrot.slane %v1413, 1
      %v1472 = vrot.slane %v1414, 1
      %v1473 = vsel %vm1157, %v1471, %v1472
      %v1474 = vrot.slane %v1415, 1
      %v1475 = vsel %vm1157, %v1472, %v1474
      %v1476 = vrot.slane %v1416, 1
      %v1477 = vrot.slane %v1417, 1
      %v1478 = vsel %vm1157, %v1476, %v1477
      %v1479 = vrot.slane %v1418, 1
      %v1480 = vsel %vm1157, %v1477, %v1479
      %v1481 = vrot.slane %v1419, 1
      %v1482 = vrot.slane %v1420, 1
      %v1483 = vsel %vm1157, %v1481, %v1482
      %v1484 = vrot.slane %v1421, 1
      %v1485 = vsel %vm1157, %v1482, %v1484
      %v1502 = vadd.f32 %v1377, %v1448
      %v1503 = vadd.f32 %v1378, %v1450
      %v1504 = vadd.f32 %v1379, %v1453
      %v1505 = vadd.f32 %v1380, %v1455
      %v1506 = vadd.f32 %v1381, %v1458
      %v1507 = vadd.f32 %v1382, %v1460
      %v1508 = vadd.f32 %v1383, %v1463
      %v1509 = vadd.f32 %v1384, %v1465
      %v1510 = vadd.f32 %v1385, %v1468
      %v1511 = vadd.f32 %v1386, %v1470
      %v1512 = vadd.f32 %v1387, %v1473
      %v1513 = vadd.f32 %v1388, %v1475
      %v1514 = vadd.f32 %v1389, %v1478
      %v1515 = vadd.f32 %v1390, %v1480
      %v1516 = vadd.f32 %v1391, %v1483
      %v1517 = vadd.f32 %v1392, %v1485
      %v1518 = vld [vmem:[%s6 + $0x5] sm:$0x1]
      %v1519 = vlaneseq
      %v1520 = vshrl.u32 %v1519, 7
      %v1521 = vsub.s32 0, %v1520
      %v1522 = vrot.slane %v1518, %v1521
      %v1523 = vmul.f32 %v1040, %v1522
      %v1524 = vmul.f32 %v1041, %v1522
      %v1525 = vmul.f32 %v1042, %v1522
      %v1526 = vmul.f32 %v1043, %v1522
      %v1527 = vmul.f32 %v1044, %v1522
      %v1528 = vmul.f32 %v1045, %v1522
      %v1529 = vmul.f32 %v1046, %v1522
      %v1530 = vmul.f32 %v1047, %v1522
      %v1531 = vmul.f32 %v1048, %v1522
      %v1532 = vmul.f32 %v1049, %v1522
      %v1533 = vmul.f32 %v1050, %v1522
      %v1534 = vmul.f32 %v1051, %v1522
      %v1535 = vmul.f32 %v1052, %v1522
      %v1536 = vmul.f32 %v1053, %v1522
      %v1537 = vmul.f32 %v1054, %v1522
      %v1538 = vmul.f32 %v1055, %v1522
      %v1539 = vmul.f32 %v1056, %v1522
      %v1540 = vmul.f32 %v1057, %v1522
      %v1541 = vmul.f32 %v1058, %v1522
      %v1542 = vmul.f32 %v1059, %v1522
      %v1543 = vmul.f32 %v1060, %v1522
      %v1544 = vmul.f32 %v1061, %v1522
      %v1545 = vmul.f32 %v1062, %v1522
      %v1546 = vmul.f32 %v1063, %v1522
      %v1571 = vrot.slane %v1523, 2
      %v1572 = vrot.slane %v1524, 2
      %v1573 = vsel %vm1283, %v1571, %v1572
      %v1574 = vrot.slane %v1525, 2
      %v1575 = vsel %vm1283, %v1572, %v1574
      %v1576 = vrot.slane %v1526, 2
      %v1577 = vrot.slane %v1527, 2
      %v1578 = vsel %vm1283, %v1576, %v1577
      %v1579 = vrot.slane %v1528, 2
      %v1580 = vsel %vm1283, %v1577, %v1579
      %v1581 = vrot.slane %v1529, 2
      %v1582 = vrot.slane %v1530, 2
      %v1583 = vsel %vm1283, %v1581, %v1582
      %v1584 = vrot.slane %v1531, 2
      %v1585 = vsel %vm1283, %v1582, %v1584
      %v1586 = vrot.slane %v1532, 2
      %v1587 = vrot.slane %v1533, 2
      %v1588 = vsel %vm1283, %v1586, %v1587
      %v1589 = vrot.slane %v1534, 2
      %v1590 = vsel %vm1283, %v1587, %v1589
      %v1591 = vrot.slane %v1535, 2
      %v1592 = vrot.slane %v1536, 2
      %v1593 = vsel %vm1283, %v1591, %v1592
      %v1594 = vrot.slane %v1537, 2
      %v1595 = vsel %vm1283, %v1592, %v1594
      %v1596 = vrot.slane %v1538, 2
      %v1597 = vrot.slane %v1539, 2
      %v1598 = vsel %vm1283, %v1596, %v1597
      %v1599 = vrot.slane %v1540, 2
      %v1600 = vsel %vm1283, %v1597, %v1599
      %v1601 = vrot.slane %v1541, 2
      %v1602 = vrot.slane %v1542, 2
      %v1603 = vsel %vm1283, %v1601, %v1602
      %v1604 = vrot.slane %v1543, 2
      %v1605 = vsel %vm1283, %v1602, %v1604
      %v1606 = vrot.slane %v1544, 2
      %v1607 = vrot.slane %v1545, 2
      %v1608 = vsel %vm1283, %v1606, %v1607
      %v1609 = vrot.slane %v1546, 2
      %v1610 = vsel %vm1283, %v1607, %v1609
      %v1627 = vadd.f32 %v1502, %v1573
      %v1628 = vadd.f32 %v1503, %v1575
      %v1629 = vadd.f32 %v1504, %v1578
      %v1630 = vadd.f32 %v1505, %v1580
      %v1631 = vadd.f32 %v1506, %v1583
      %v1632 = vadd.f32 %v1507, %v1585
      %v1633 = vadd.f32 %v1508, %v1588
      %v1634 = vadd.f32 %v1509, %v1590
      %v1635 = vadd.f32 %v1510, %v1593
      %v1636 = vadd.f32 %v1511, %v1595
      %v1637 = vadd.f32 %v1512, %v1598
      %v1638 = vadd.f32 %v1513, %v1600
      %v1639 = vadd.f32 %v1514, %v1603
      %v1640 = vadd.f32 %v1515, %v1605
      %v1641 = vadd.f32 %v1516, %v1608
      %v1642 = vadd.f32 %v1517, %v1610
      %v1643 = vld [vmem:[%s6 + $0x6] sm:$0x1]
      %v1644 = vlaneseq
      %v1645 = vshrl.u32 %v1644, 7
      %v1646 = vsub.s32 0, %v1645
      %v1647 = vrot.slane %v1643, %v1646
      %v1648 = vmul.f32 %v1043, %v1647
      %v1649 = vmul.f32 %v1044, %v1647
      %v1650 = vmul.f32 %v1046, %v1647
      %v1651 = vmul.f32 %v1047, %v1647
      %v1652 = vmul.f32 %v1049, %v1647
      %v1653 = vmul.f32 %v1050, %v1647
      %v1654 = vmul.f32 %v1052, %v1647
      %v1655 = vmul.f32 %v1053, %v1647
      %v1656 = vmul.f32 %v1055, %v1647
      %v1657 = vmul.f32 %v1056, %v1647
      %v1658 = vmul.f32 %v1058, %v1647
      %v1659 = vmul.f32 %v1059, %v1647
      %v1660 = vmul.f32 %v1061, %v1647
      %v1661 = vmul.f32 %v1062, %v1647
      %v1662 = vmul.f32 %v1064, %v1647
      %v1663 = vmul.f32 %v1065, %v1647
      %v1664 = vadd.f32 %v1627, %v1648
      %v1665 = vadd.f32 %v1628, %v1649
      %v1666 = vadd.f32 %v1629, %v1650
      %v1667 = vadd.f32 %v1630, %v1651
      %v1668 = vadd.f32 %v1631, %v1652
      %v1669 = vadd.f32 %v1632, %v1653
      %v1670 = vadd.f32 %v1633, %v1654
      %v1671 = vadd.f32 %v1634, %v1655
      %v1672 = vadd.f32 %v1635, %v1656
      %v1673 = vadd.f32 %v1636, %v1657
      %v1674 = vadd.f32 %v1637, %v1658
      %v1675 = vadd.f32 %v1638, %v1659
      %v1676 = vadd.f32 %v1639, %v1660
      %v1677 = vadd.f32 %v1640, %v1661
      %v1678 = vadd.f32 %v1641, %v1662
      %v1679 = vadd.f32 %v1642, %v1663
      %v1680 = vld [vmem:[%s6 + $0x7] sm:$0x1]
      %v1681 = vlaneseq
      %v1682 = vshrl.u32 %v1681, 7
      %v1683 = vsub.s32 0, %v1682
      %v1684 = vrot.slane %v1680, %v1683
      %v1685 = vmul.f32 %v1043, %v1684
      %v1686 = vmul.f32 %v1044, %v1684
      %v1687 = vmul.f32 %v1045, %v1684
      %v1688 = vmul.f32 %v1046, %v1684
      %v1689 = vmul.f32 %v1047, %v1684
      %v1690 = vmul.f32 %v1048, %v1684
      %v1691 = vmul.f32 %v1049, %v1684
      %v1692 = vmul.f32 %v1050, %v1684
      %v1693 = vmul.f32 %v1051, %v1684
      %v1694 = vmul.f32 %v1052, %v1684
      %v1695 = vmul.f32 %v1053, %v1684
      %v1696 = vmul.f32 %v1054, %v1684
      %v1697 = vmul.f32 %v1055, %v1684
      %v1698 = vmul.f32 %v1056, %v1684
      %v1699 = vmul.f32 %v1057, %v1684
      %v1700 = vmul.f32 %v1058, %v1684
      %v1701 = vmul.f32 %v1059, %v1684
      %v1702 = vmul.f32 %v1060, %v1684
      %v1703 = vmul.f32 %v1061, %v1684
      %v1704 = vmul.f32 %v1062, %v1684
      %v1705 = vmul.f32 %v1063, %v1684
      %v1706 = vmul.f32 %v1064, %v1684
      %v1707 = vmul.f32 %v1065, %v1684
      %v1708 = vmul.f32 %v1066, %v1684
      %v1733 = vrot.slane %v1685, 1
      %v1734 = vrot.slane %v1686, 1
      %v1735 = vsel %vm1157, %v1733, %v1734
      %v1736 = vrot.slane %v1687, 1
      %v1737 = vsel %vm1157, %v1734, %v1736
      %v1738 = vrot.slane %v1688, 1
      %v1739 = vrot.slane %v1689, 1
      %v1740 = vsel %vm1157, %v1738, %v1739
      %v1741 = vrot.slane %v1690, 1
      %v1742 = vsel %vm1157, %v1739, %v1741
      %v1743 = vrot.slane %v1691, 1
      %v1744 = vrot.slane %v1692, 1
      %v1745 = vsel %vm1157, %v1743, %v1744
      %v1746 = vrot.slane %v1693, 1
      %v1747 = vsel %vm1157, %v1744, %v1746
      %v1748 = vrot.slane %v1694, 1
      %v1749 = vrot.slane %v1695, 1
      %v1750 = vsel %vm1157, %v1748, %v1749
      %v1751 = vrot.slane %v1696, 1
      %v1752 = vsel %vm1157, %v1749, %v1751
      %v1753 = vrot.slane %v1697, 1
      %v1754 = vrot.slane %v1698, 1
      %v1755 = vsel %vm1157, %v1753, %v1754
      %v1756 = vrot.slane %v1699, 1
      %v1757 = vsel %vm1157, %v1754, %v1756
      %v1758 = vrot.slane %v1700, 1
      %v1759 = vrot.slane %v1701, 1
      %v1760 = vsel %vm1157, %v1758, %v1759
      %v1761 = vrot.slane %v1702, 1
      %v1762 = vsel %vm1157, %v1759, %v1761
      %v1763 = vrot.slane %v1703, 1
      %v1764 = vrot.slane %v1704, 1
      %v1765 = vsel %vm1157, %v1763, %v1764
      %v1766 = vrot.slane %v1705, 1
      %v1767 = vsel %vm1157, %v1764, %v1766
      %v1768 = vrot.slane %v1706, 1
      %v1769 = vrot.slane %v1707, 1
      %v1770 = vsel %vm1157, %v1768, %v1769
      %v1771 = vrot.slane %v1708, 1
      %v1772 = vsel %vm1157, %v1769, %v1771
      %v1789 = vadd.f32 %v1664, %v1735
      %v1790 = vadd.f32 %v1665, %v1737
      %v1791 = vadd.f32 %v1666, %v1740
      %v1792 = vadd.f32 %v1667, %v1742
      %v1793 = vadd.f32 %v1668, %v1745
      %v1794 = vadd.f32 %v1669, %v1747
      %v1795 = vadd.f32 %v1670, %v1750
      %v1796 = vadd.f32 %v1671, %v1752
      %v1797 = vadd.f32 %v1672, %v1755
      %v1798 = vadd.f32 %v1673, %v1757
      %v1799 = vadd.f32 %v1674, %v1760
      %v1800 = vadd.f32 %v1675, %v1762
      %v1801 = vadd.f32 %v1676, %v1765
      %v1802 = vadd.f32 %v1677, %v1767
      %v1803 = vadd.f32 %v1678, %v1770
      %v1804 = vadd.f32 %v1679, %v1772
      %v1805 = vld [vmem:[%s6 + $0x8] sm:$0x1]
      %v1806 = vlaneseq
      %v1807 = vshrl.u32 %v1806, 7
      %v1808 = vsub.s32 0, %v1807
      %v1809 = vrot.slane %v1805, %v1808
      %v1810 = vmul.f32 %v1043, %v1809
      %v1811 = vmul.f32 %v1044, %v1809
      %v1812 = vmul.f32 %v1045, %v1809
      %v1813 = vmul.f32 %v1046, %v1809
      %v1814 = vmul.f32 %v1047, %v1809
      %v1815 = vmul.f32 %v1048, %v1809
      %v1816 = vmul.f32 %v1049, %v1809
      %v1817 = vmul.f32 %v1050, %v1809
      %v1818 = vmul.f32 %v1051, %v1809
      %v1819 = vmul.f32 %v1052, %v1809
      %v1820 = vmul.f32 %v1053, %v1809
      %v1821 = vmul.f32 %v1054, %v1809
      %v1822 = vmul.f32 %v1055, %v1809
      %v1823 = vmul.f32 %v1056, %v1809
      %v1824 = vmul.f32 %v1057, %v1809
      %v1825 = vmul.f32 %v1058, %v1809
      %v1826 = vmul.f32 %v1059, %v1809
      %v1827 = vmul.f32 %v1060, %v1809
      %v1828 = vmul.f32 %v1061, %v1809
      %v1829 = vmul.f32 %v1062, %v1809
      %v1830 = vmul.f32 %v1063, %v1809
      %v1831 = vmul.f32 %v1064, %v1809
      %v1832 = vmul.f32 %v1065, %v1809
      %v1833 = vmul.f32 %v1066, %v1809
      %v1858 = vrot.slane %v1810, 2
      %v1859 = vrot.slane %v1811, 2
      %v1860 = vsel %vm1283, %v1858, %v1859
      %v1861 = vrot.slane %v1812, 2
      %v1862 = vsel %vm1283, %v1859, %v1861
      %v1863 = vrot.slane %v1813, 2
      %v1864 = vrot.slane %v1814, 2
      %v1865 = vsel %vm1283, %v1863, %v1864
      %v1866 = vrot.slane %v1815, 2
      %v1867 = vsel %vm1283, %v1864, %v1866
      %v1868 = vrot.slane %v1816, 2
      %v1869 = vrot.slane %v1817, 2
      %v1870 = vsel %vm1283, %v1868, %v1869
      %v1871 = vrot.slane %v1818, 2
      %v1872 = vsel %vm1283, %v1869, %v1871
      %v1873 = vrot.slane %v1819, 2
      %v1874 = vrot.slane %v1820, 2
      %v1875 = vsel %vm1283, %v1873, %v1874
      %v1876 = vrot.slane %v1821, 2
      %v1877 = vsel %vm1283, %v1874, %v1876
      %v1878 = vrot.slane %v1822, 2
      %v1879 = vrot.slane %v1823, 2
      %v1880 = vsel %vm1283, %v1878, %v1879
      %v1881 = vrot.slane %v1824, 2
      %v1882 = vsel %vm1283, %v1879, %v1881
      %v1883 = vrot.slane %v1825, 2
      %v1884 = vrot.slane %v1826, 2
      %v1885 = vsel %vm1283, %v1883, %v1884
      %v1886 = vrot.slane %v1827, 2
      %v1887 = vsel %vm1283, %v1884, %v1886
      %v1888 = vrot.slane %v1828, 2
      %v1889 = vrot.slane %v1829, 2
      %v1890 = vsel %vm1283, %v1888, %v1889
      %v1891 = vrot.slane %v1830, 2
      %v1892 = vsel %vm1283, %v1889, %v1891
      %v1893 = vrot.slane %v1831, 2
      %v1894 = vrot.slane %v1832, 2
      %v1895 = vsel %vm1283, %v1893, %v1894
      %v1896 = vrot.slane %v1833, 2
      %v1897 = vsel %vm1283, %v1894, %v1896
      %v1914 = vadd.f32 %v1789, %v1860
      %v1915 = vadd.f32 %v1790, %v1862
      %v1916 = vadd.f32 %v1791, %v1865
      %v1917 = vadd.f32 %v1792, %v1867
      %v1918 = vadd.f32 %v1793, %v1870
      %v1919 = vadd.f32 %v1794, %v1872
      %v1920 = vadd.f32 %v1795, %v1875
      %v1921 = vadd.f32 %v1796, %v1877
      %v1922 = vadd.f32 %v1797, %v1880
      %v1923 = vadd.f32 %v1798, %v1882
      %v1924 = vadd.f32 %v1799, %v1885
      %v1925 = vadd.f32 %v1800, %v1887
      %v1926 = vadd.f32 %v1801, %v1890
      %v1927 = vadd.f32 %v1802, %v1892
      %v1928 = vadd.f32 %v1803, %v1895
      %v1929 = vadd.f32 %v1804, %v1897
      %v1930 = vld [vmem:[%s7] sm:$0x1]
      %v1932 = vlaneseq
      %v1933 = vshrl.u32 %v1932, 7
      %v1934 = vsub.s32 0, %v1933
      %v1935 = vrot.slane %v1930, %v1934
      %v1937 = vmul.f32 %v1914, %v1935
      %v1938 = vmul.f32 %v1915, %v1935
      %v1939 = vmul.f32 %v1916, %v1935
      %v1940 = vmul.f32 %v1917, %v1935
      %v1941 = vmul.f32 %v1918, %v1935
      %v1942 = vmul.f32 %v1919, %v1935
      %v1943 = vmul.f32 %v1920, %v1935
      %v1944 = vmul.f32 %v1921, %v1935
      %v1945 = vmul.f32 %v1922, %v1935
      %v1946 = vmul.f32 %v1923, %v1935
      %v1947 = vmul.f32 %v1924, %v1935
      %v1948 = vmul.f32 %v1925, %v1935
      %v1949 = vmul.f32 %v1926, %v1935
      %v1950 = vmul.f32 %v1927, %v1935
      %v1951 = vmul.f32 %v1928, %v1935
      %v1952 = vmul.f32 %v1929, %v1935
      %v1953 = vld [vmem:[%s8] sm:$0x1]
      %v1955 = vlaneseq
      %v1956 = vshrl.u32 %v1955, 7
      %v1957 = vsub.s32 0, %v1956
      %v1958 = vrot.slane %v1953, %v1957
      %v1960 = vadd.f32 %v1937, %v1958
      %v1961 = vadd.f32 %v1938, %v1958
      %v1962 = vadd.f32 %v1939, %v1958
      %v1963 = vadd.f32 %v1940, %v1958
      %v1964 = vadd.f32 %v1941, %v1958
      %v1965 = vadd.f32 %v1942, %v1958
      %v1966 = vadd.f32 %v1943, %v1958
      %v1967 = vadd.f32 %v1944, %v1958
      %v1968 = vadd.f32 %v1945, %v1958
      %v1969 = vadd.f32 %v1946, %v1958
      %v1970 = vadd.f32 %v1947, %v1958
      %v1971 = vadd.f32 %v1948, %v1958
      %v1972 = vadd.f32 %v1949, %v1958
      %v1973 = vadd.f32 %v1950, %v1958
      %v1974 = vadd.f32 %v1951, %v1958
      %v1975 = vadd.f32 %v1952, %v1958
      %v1976 = vmax.f32 %v1960, 0.0
      %v1977 = vmax.f32 %v1961, 0.0
      %v1978 = vmax.f32 %v1962, 0.0
      %v1979 = vmax.f32 %v1963, 0.0
      %v1980 = vmax.f32 %v1964, 0.0
      %v1981 = vmax.f32 %v1965, 0.0
      %v1982 = vmax.f32 %v1966, 0.0
      %v1983 = vmax.f32 %v1967, 0.0
      %v1984 = vmax.f32 %v1968, 0.0
      %v1985 = vmax.f32 %v1969, 0.0
      %v1986 = vmax.f32 %v1970, 0.0
      %v1987 = vmax.f32 %v1971, 0.0
      %v1988 = vmax.f32 %v1972, 0.0
      %v1989 = vmax.f32 %v1973, 0.0
      %v1990 = vmax.f32 %v1974, 0.0
      %v1991 = vmax.f32 %v1975, 0.0
      %v1992 = vmin.f32 %v1976, 6.0
      %v1993 = vmin.f32 %v1977, 6.0
      %v1994 = vmin.f32 %v1978, 6.0
      %v1995 = vmin.f32 %v1979, 6.0
      %v1996 = vmin.f32 %v1980, 6.0
      %v1997 = vmin.f32 %v1981, 6.0
      %v1998 = vmin.f32 %v1982, 6.0
      %v1999 = vmin.f32 %v1983, 6.0
      %v2000 = vmin.f32 %v1984, 6.0
      %v2001 = vmin.f32 %v1985, 6.0
      %v2002 = vmin.f32 %v1986, 6.0
      %v2003 = vmin.f32 %v1987, 6.0
      %v2004 = vmin.f32 %v1988, 6.0
      %v2005 = vmin.f32 %v1989, 6.0
      %v2006 = vmin.f32 %v1990, 6.0
      %v2007 = vmin.f32 %v1991, 6.0
      %v2008 = vld [vmem:[%s9] sm:$0xff]
      %v2009 = vld [vmem:[%s9 + $0x8] sm:$0xff]
      %vm2010 = vcmask 130048
      %v2012 = vsel %vm2010, %v1992, 0
      %v2015 = vsel %vm2010, %v1993, 0
      %v2018 = vsel %vm2010, %v1994, 0
      %v2021 = vsel %vm2010, %v1995, 0
      %v2024 = vsel %vm2010, %v1996, 0
      %v2027 = vsel %vm2010, %v1997, 0
      %v2030 = vsel %vm2010, %v1998, 0
      %v2033 = vsel %vm2010, %v1999, 0
      %v2036 = vsel %vm2010, %v2000, 0
      %v2039 = vsel %vm2010, %v2001, 0
      %v2042 = vsel %vm2010, %v2002, 0
      %v2045 = vsel %vm2010, %v2003, 0
      %v2048 = vsel %vm2010, %v2004, 0
      %v2051 = vsel %vm2010, %v2005, 0
      %v2054 = vsel %vm2010, %v2006, 0
      %v2057 = vsel %vm2010, %v2007, 0
      %2059 = vmatprep.subr.mxu0 0.0
      %2060 = vmatpush1.msra.mxu0 %v2008
      %2061 = vmatprep.subr.mxu0 0.0
      %2062 = vmatpush1.msra.mxu0 %v2009
      %2063 = vmatprep.subr.mxu0 0.0
      %2064 = vmatpush1.msra.mxu0 0.0
      %2065 = vmatprep.subr.mxu0 0.0
      %2066 = vmatpush1.msra.mxu0 0.0
      %2067 = vmatprep.subr.mxu0 0.0
      %2068 = vmatpush1.msra.mxu0 0.0
      %2069 = vmatprep.subr.mxu0 0.0
      %2070 = vmatpush1.msra.mxu0 0.0
      %2071 = vmatprep.subr.mxu0 0.0
      %2072 = vmatpush1.msra.mxu0 0.0
      %2073 = vmatprep.subr.mxu0 0.0
      %2074 = vmatpush1.msra.mxu0 0.0
      %2075 = vmatprep.subr.mxu0 0.0
      %2076 = vmatpush1.msra.mxu0 0.0
      %2077 = vmatprep.subr.mxu0 0.0
      %2078 = vmatpush1.msra.mxu0 0.0
      %2079 = vmatprep.subr.mxu0 0.0
      %2080 = vmatpush1.msra.mxu0 0.0
      %2081 = vmatprep.subr.mxu0 0.0
      %2082 = vmatpush1.msra.mxu0 0.0
      %2083 = vmatprep.subr.mxu0 0.0
      %2084 = vmatpush1.msra.mxu0 0.0
      %2085 = vmatprep.subr.mxu0 0.0
      %2086 = vmatpush1.msra.mxu0 0.0
      %2087 = vmatprep.subr.mxu0 0.0
      %2088 = vmatpush1.msra.mxu0 0.0
      %2089 = vmatprep.subr.mxu0 0.0
      %2090 = vmatpush1.msra.mxu0 0.0
      %2091 = vmatprep.subr.mxu0 0.0
      %2092 = vmatpush1.msra.mxu0 0.0
      %2093 = vmatprep.subr.mxu0 0.0
      %2094 = vmatpush1.msra.mxu0 0.0
      %2095 = vmatprep.subr.mxu0 0.0
      %2096 = vmatpush1.msra.mxu0 0.0
      %2097 = vmatprep.subr.mxu0 0.0
      %2098 = vmatpush1.msra.mxu0 0.0
      %2099 = vmatprep.subr.mxu0 0.0
      %2100 = vmatpush1.msra.mxu0 0.0
      %2101 = vmatprep.subr.mxu0 0.0
      %2102 = vmatpush1.msra.mxu0 0.0
      %2103 = vmatprep.subr.mxu0 0.0
      %2104 = vmatpush1.msra.mxu0 0.0
      %2105 = vmatprep.subr.mxu0 0.0
      %2106 = vmatpush1.msra.mxu0 0.0
      %2107 = vmatprep.subr.mxu0 0.0
      %2108 = vmatpush1.msra.mxu0 0.0
      %2109 = vmatprep.subr.mxu0 0.0
      %2110 = vmatpush1.msra.mxu0 0.0
      %2111 = vmatprep.subr.mxu0 0.0
      %2112 = vmatpush1.msra.mxu0 0.0
      %2113 = vmatprep.subr.mxu0 0.0
      %2114 = vmatpush1.msra.mxu0 0.0
      %2115 = vmatprep.subr.mxu0 0.0
      %2116 = vmatpush1.msra.mxu0 0.0
      %2117 = vmatprep.subr.mxu0 0.0
      %2118 = vmatpush1.msra.mxu0 0.0
      %2119 = vmatprep.subr.mxu0 0.0
      %2120 = vmatpush1.msra.mxu0 0.0
      %2121 = vmatprep.subr.mxu0 0.0
      %2122 = vmatpush1.msra.mxu0 0.0
      %2123 = vmatprep.mubr.f32.mxu0 0.0
      %2124 = vmatmul.mubr.f32.gmra.mrb[0].mxu0 %v2012
      %v2125 = vpop.f32.mrb[0].mxu0
      %v2126 = vadd.f32 0.0, %v2125
      %v2127 = vpop.f32.mrb[0].mxu0
      %2128 = vmatprep.mubr.f32.mxu0 0.0
      %2129 = vmatmul.mubr.f32.gmra.mrb[0].mxu0 %v2015
      %v2130 = vpop.f32.mrb[0].mxu0
      %v2131 = vadd.f32 0.0, %v2130
      %v2132 = vpop.f32.mrb[0].mxu0
      %2133 = vmatprep.mubr.f32.mxu0 0.0
      %2134 = vmatmul.mubr.f32.gmra.mrb[0].mxu0 %v2018
      %v2135 = vpop.f32.mrb[0].mxu0
      %v2136 = vadd.f32 0.0, %v2135
      %v2137 = vpop.f32.mrb[0].mxu0
      %2138 = vmatprep.mubr.f32.mxu0 0.0
      %2139 = vmatmul.mubr.f32.gmra.mrb[0].mxu0 %v2021
      %v2140 = vpop.f32.mrb[0].mxu0
      %v2141 = vadd.f32 0.0, %v2140
      %v2142 = vpop.f32.mrb[0].mxu0
      %2143 = vmatprep.mubr.f32.mxu0 0.0
      %2144 = vmatmul.mubr.f32.gmra.mrb[0].mxu0 %v2024
      %v2145 = vpop.f32.mrb[0].mxu0
      %v2146 = vadd.f32 0.0, %v2145
      %v2147 = vpop.f32.mrb[0].mxu0
      %2148 = vmatprep.mubr.f32.mxu0 0.0
      %2149 = vmatmul.mubr.f32.gmra.mrb[0].mxu0 %v2027
      %v2150 = vpop.f32.mrb[0].mxu0
      %v2151 = vadd.f32 0.0, %v2150
      %v2152 = vpop.f32.mrb[0].mxu0
      %2153 = vmatprep.mubr.f32.mxu0 0.0
      %2154 = vmatmul.mubr.f32.gmra.mrb[0].mxu0 %v2030
      %v2155 = vpop.f32.mrb[0].mxu0
      %v2156 = vadd.f32 0.0, %v2155
      %v2157 = vpop.f32.mrb[0].mxu0
      %2158 = vmatprep.mubr.f32.mxu0 0.0
      %2159 = vmatmul.mubr.f32.gmra.mrb[0].mxu0 %v2033
      %v2160 = vpop.f32.mrb[0].mxu0
      %v2161 = vadd.f32 0.0, %v2160
      %v2162 = vpop.f32.mrb[0].mxu0
      %2163 = vmatprep.mubr.f32.mxu0 0.0
      %2164 = vmatmul.mubr.f32.gmra.mrb[0].mxu0 %v2036
      %v2165 = vpop.f32.mrb[0].mxu0
      %v2166 = vadd.f32 0.0, %v2165
      %v2167 = vpop.f32.mrb[0].mxu0
      %2168 = vmatprep.mubr.f32.mxu0 0.0
      %2169 = vmatmul.mubr.f32.gmra.mrb[0].mxu0 %v2039
      %v2170 = vpop.f32.mrb[0].mxu0
      %v2171 = vadd.f32 0.0, %v2170
      %v2172 = vpop.f32.mrb[0].mxu0
      %2173 = vmatprep.mubr.f32.mxu0 0.0
      %2174 = vmatmul.mubr.f32.gmra.mrb[0].mxu0 %v2042
      %v2175 = vpop.f32.mrb[0].mxu0
      %v2176 = vadd.f32 0.0, %v2175
      %v2177 = vpop.f32.mrb[0].mxu0
      %2178 = vmatprep.mubr.f32.mxu0 0.0
      %2179 = vmatmul.mubr.f32.gmra.mrb[0].mxu0 %v2045
      %v2180 = vpop.f32.mrb[0].mxu0
      %v2181 = vadd.f32 0.0, %v2180
      %v2182 = vpop.f32.mrb[0].mxu0
      %2183 = vmatprep.mubr.f32.mxu0 0.0
      %2184 = vmatmul.mubr.f32.gmra.mrb[0].mxu0 %v2048
      %v2185 = vpop.f32.mrb[0].mxu0
      %v2186 = vadd.f32 0.0, %v2185
      %v2187 = vpop.f32.mrb[0].mxu0
      %2188 = vmatprep.mubr.f32.mxu0 0.0
      %2189 = vmatmul.mubr.f32.gmra.mrb[0].mxu0 %v2051
      %v2190 = vpop.f32.mrb[0].mxu0
      %v2191 = vadd.f32 0.0, %v2190
      %v2192 = vpop.f32.mrb[0].mxu0
      %2193 = vmatprep.mubr.f32.mxu0 0.0
      %2194 = vmatmul.mubr.f32.gmra.mrb[0].mxu0 %v2054
      %v2195 = vpop.f32.mrb[0].mxu0
      %v2196 = vadd.f32 0.0, %v2195
      %v2197 = vpop.f32.mrb[0].mxu0
      %2198 = vmatprep.mubr.f32.mxu0 0.0
      %2199 = vmatmul.mubr.f32.gmra.mrb[0].mxu0 %v2057
      %v2200 = vpop.f32.mrb[0].mxu0
      %v2201 = vadd.f32 0.0, %v2200
      %v2202 = vpop.f32.mrb[0].mxu0
      %2203 = vdwg.mxu0
      %v2204 = vld [vmem:[%s10] sm:$0x1]
      %v2206 = vlaneseq
      %v2207 = vshrl.u32 %v2206, 7
      %v2208 = vsub.s32 0, %v2207
      %v2209 = vrot.slane %v2204, %v2208
      %v2211 = vmul.f32 %v2126, %v2209
      %v2212 = vmul.f32 %v2131, %v2209
      %v2213 = vmul.f32 %v2136, %v2209
      %v2214 = vmul.f32 %v2141, %v2209
      %v2215 = vmul.f32 %v2146, %v2209
      %v2216 = vmul.f32 %v2151, %v2209
      %v2217 = vmul.f32 %v2156, %v2209
      %v2218 = vmul.f32 %v2161, %v2209
      %v2219 = vmul.f32 %v2166, %v2209
      %v2220 = vmul.f32 %v2171, %v2209
      %v2221 = vmul.f32 %v2176, %v2209
      %v2222 = vmul.f32 %v2181, %v2209
      %v2223 = vmul.f32 %v2186, %v2209
      %v2224 = vmul.f32 %v2191, %v2209
      %v2225 = vmul.f32 %v2196, %v2209
      %v2226 = vmul.f32 %v2201, %v2209
      %v2227 = vld [vmem:[%s11] sm:$0x1]
      %v2229 = vlaneseq
      %v2230 = vshrl.u32 %v2229, 7
      %v2231 = vsub.s32 0, %v2230
      %v2232 = vrot.slane %v2227, %v2231
      %v2234 = vadd.f32 %v2211, %v2232
      %v2235 = vadd.f32 %v2212, %v2232
      %v2236 = vadd.f32 %v2213, %v2232
      %v2237 = vadd.f32 %v2214, %v2232
      %v2238 = vadd.f32 %v2215, %v2232
      %v2239 = vadd.f32 %v2216, %v2232
      %v2240 = vadd.f32 %v2217, %v2232
      %v2241 = vadd.f32 %v2218, %v2232
      %v2242 = vadd.f32 %v2219, %v2232
      %v2243 = vadd.f32 %v2220, %v2232
      %v2244 = vadd.f32 %v2221, %v2232
      %v2245 = vadd.f32 %v2222, %v2232
      %v2246 = vadd.f32 %v2223, %v2232
      %v2247 = vadd.f32 %v2224, %v2232
      %v2248 = vadd.f32 %v2225, %v2232
      %v2249 = vadd.f32 %v2226, %v2232
      %s2250 = sadd.s32 %s456, 1
      %s2251 = smul.u32 %s2250, 24
      %s2252 = scalar_lea.vmem %s440, %s2251
      %v2253 = vld [vmem:[%s2252] sm:$0xff]
      %v2254 = vld [vmem:[%s2252 + $0x8] sm:$0xff]
      %v2255 = vld [vmem:[%s2252 + $0x10] sm:$0xff]
      %v2256 = vld [vmem:[%s2252 + $0x18] sm:$0xff]
      %v2257 = vld [vmem:[%s2252 + $0x20] sm:$0xff]
      %v2258 = vld [vmem:[%s2252 + $0x28] sm:$0xff]
      %v2259 = vld [vmem:[%s2252 + $0x30] sm:$0xff]
      %v2260 = vld [vmem:[%s2252 + $0x38] sm:$0xff]
      %v2261 = vld [vmem:[%s2252 + $0x40] sm:$0xff]
      %v2262 = vld [vmem:[%s2252 + $0x48] sm:$0xff]
      %v2263 = vld [vmem:[%s2252 + $0x50] sm:$0xff]
      %v2264 = vld [vmem:[%s2252 + $0x58] sm:$0xff]
      %v2265 = vld [vmem:[%s2252 + $0x60] sm:$0xff]
      %v2266 = vld [vmem:[%s2252 + $0x68] sm:$0xff]
      %v2267 = vld [vmem:[%s2252 + $0x70] sm:$0xff]
      %v2268 = vld [vmem:[%s2252 + $0x78] sm:$0xff]
      %v2269 = vld [vmem:[%s2252 + $0x80] sm:$0xff]
      %v2270 = vld [vmem:[%s2252 + $0x88] sm:$0xff]
      %v2271 = vld [vmem:[%s2252 + $0x90] sm:$0xff]
      %v2272 = vld [vmem:[%s2252 + $0x98] sm:$0xff]
      %v2273 = vld [vmem:[%s2252 + $0xa0] sm:$0xff]
      %v2274 = vld [vmem:[%s2252 + $0xa8] sm:$0xff]
      %v2275 = vld [vmem:[%s2252 + $0xb0] sm:$0xff]
      %v2276 = vld [vmem:[%s2252 + $0xb8] sm:$0xff]
      %v2301 = vrot.slane %v2253, 1
      %v2302 = vrot.slane %v2254, 1
      %v2303 = vsel %vm1157, %v2301, %v2302
      %v2304 = vrot.slane %v2255, 1
      %v2305 = vsel %vm1157, %v2302, %v2304
      %v2306 = vrot.slane %v2256, 1
      %v2307 = vrot.slane %v2257, 1
      %v2308 = vsel %vm1157, %v2306, %v2307
      %v2309 = vrot.slane %v2258, 1
      %v2310 = vsel %vm1157, %v2307, %v2309
      %v2311 = vrot.slane %v2259, 1
      %v2312 = vrot.slane %v2260, 1
      %v2313 = vsel %vm1157, %v2311, %v2312
      %v2314 = vrot.slane %v2261, 1
      %v2315 = vsel %vm1157, %v2312, %v2314
      %v2316 = vrot.slane %v2262, 1
      %v2317 = vrot.slane %v2263, 1
      %v2318 = vsel %vm1157, %v2316, %v2317
      %v2319 = vrot.slane %v2264, 1
      %v2320 = vsel %vm1157, %v2317, %v2319
      %v2321 = vrot.slane %v2265, 1
      %v2322 = vrot.slane %v2266, 1
      %v2323 = vsel %vm1157, %v2321, %v2322
      %v2324 = vrot.slane %v2267, 1
      %v2325 = vsel %vm1157, %v2322, %v2324
      %v2326 = vrot.slane %v2268, 1
      %v2327 = vrot.slane %v2269, 1
      %v2328 = vsel %vm1157, %v2326, %v2327
      %v2329 = vrot.slane %v2270, 1
      %v2330 = vsel %vm1157, %v2327, %v2329
      %v2331 = vrot.slane %v2271, 1
      %v2332 = vrot.slane %v2272, 1
      %v2333 = vsel %vm1157, %v2331, %v2332
      %v2334 = vrot.slane %v2273, 1
      %v2335 = vsel %vm1157, %v2332, %v2334
      %v2336 = vrot.slane %v2274, 1
      %v2337 = vrot.slane %v2275, 1
      %v2338 = vsel %vm1157, %v2336, %v2337
      %v2339 = vrot.slane %v2276, 1
      %v2340 = vsel %vm1157, %v2337, %v2339
      %v2357 = vadd.f32 %v2234, %v2303
      %v2358 = vadd.f32 %v2235, %v2305
      %v2359 = vadd.f32 %v2236, %v2308
      %v2360 = vadd.f32 %v2237, %v2310
      %v2361 = vadd.f32 %v2238, %v2313
      %v2362 = vadd.f32 %v2239, %v2315
      %v2363 = vadd.f32 %v2240, %v2318
      %v2364 = vadd.f32 %v2241, %v2320
      %v2365 = vadd.f32 %v2242, %v2323
      %v2366 = vadd.f32 %v2243, %v2325
      %v2367 = vadd.f32 %v2244, %v2328
      %v2368 = vadd.f32 %v2245, %v2330
      %v2369 = vadd.f32 %v2246, %v2333
      %v2370 = vadd.f32 %v2247, %v2335
      %v2371 = vadd.f32 %v2248, %v2338
      %v2372 = vadd.f32 %v2249, %v2340
      %2373 = vst.msk [vmem:[%s454] sm:$0xff] %vm490, %v2357
      %2374 = vst.msk [vmem:[%s454 + $0x8] sm:$0xff] %vm490, %v2358
      %2375 = vst.msk [vmem:[%s454 + $0x10] sm:$0xff] %vm490, %v2359
      %2376 = vst.msk [vmem:[%s454 + $0x18] sm:$0xff] %vm490, %v2360
      %2377 = vst.msk [vmem:[%s454 + $0x20] sm:$0xff] %vm490, %v2361
      %2378 = vst.msk [vmem:[%s454 + $0x28] sm:$0xff] %vm490, %v2362
      %2379 = vst.msk [vmem:[%s454 + $0x30] sm:$0xff] %vm490, %v2363
      %2380 = vst.msk [vmem:[%s454 + $0x38] sm:$0xff] %vm490, %v2364
      %2381 = vst.msk [vmem:[%s454 + $0x40] sm:$0xff] %vm490, %v2365
      %2382 = vst.msk [vmem:[%s454 + $0x48] sm:$0xff] %vm490, %v2366
      %2383 = vst.msk [vmem:[%s454 + $0x50] sm:$0xff] %vm490, %v2367
      %2384 = vst.msk [vmem:[%s454 + $0x58] sm:$0xff] %vm490, %v2368
      %2385 = vst.msk [vmem:[%s454 + $0x60] sm:$0xff] %vm490, %v2369
      %2386 = vst.msk [vmem:[%s454 + $0x68] sm:$0xff] %vm490, %v2370
      %2387 = vst.msk [vmem:[%s454 + $0x70] sm:$0xff] %vm490, %v2371
      %2388 = vst.msk [vmem:[%s454 + $0x78] sm:$0xff] %vm490, %v2372
      %s2389 = smul.u32 8, %s28
      %p2390 = scmp.lt.s32.totalorder %s27, 1
      %s2391 = scalar_select %p2390, %s27, 1
      %p2392 = scmp.lt.s32.totalorder %s2389, 15
      %s2393 = scalar_select %p2392, %s2389, 15
      %s2394 = smul.addr %s2393, 2
      %s2395 = smul.addr %s2391, 32
      %s2396 = sadd.s32 %s2394, %s2395
      %s2397 = smul.addr %s2396, 8
      %s2398 = scalar_lea.vmem %s12, %s2397
      // Predicated region
      $region69: #{tpu_custom_call.1} parent=67 // pred_check
        %p2399 = pneg %p317
      $region70: #{tpu_custom_call.1} parent=67 // pred_check_branch
        %2401 = sbr.rel (%p2399) target = $region72
      $region71: #{tpu_custom_call.1} parent=67 // pred_region
        %s2402 = smul.u32 8, %s28
      $region72: #{tpu_custom_call.1} parent=67 // pred_fallthru
        _
    $region68: #{tpu_custom_call.1} parent=5 // pred_fallthru
      _
    %p2403 = scmp.le.s32.totalorder 2, %s18
    // Predicated region
    $region73: #{tpu_custom_call.1} parent=5 // pred_check
      %p2404 = pneg %p2403
    $region74: #{tpu_custom_call.1} parent=5 // pred_check_branch
      %2406 = sbr.rel (%p2404) target = $region76
    $region75: #{tpu_custom_call.1} parent=5 // pred_region
      %s2407 = ssub.s32 %s18, 2
      // Predicated region
      $region77: #{tpu_custom_call.1} parent=75 // pred_check
        %p2408 = pneg %p323
      $region78: #{tpu_custom_call.1} parent=75 // pred_check_branch
        %2410 = sbr.rel (%p2408) target = $region80
      $region79: #{tpu_custom_call.1} parent=75 // pred_region
        %s2411 = smul.u32 8, %s30
        %p2412 = scmp.lt.s32.totalorder %s29, 1
        %s2413 = scalar_select %p2412, %s29, 1
        %p2414 = scmp.lt.s32.totalorder %s2411, 15
        %s2415 = scalar_select %p2414, %s2411, 15
        %s2416 = smul.addr %s2415, 2
        %s2417 = smul.addr %s2413, 32
        %s2418 = sadd.s32 %s2416, %s2417
        %s2419 = smul.addr %s2418, 8
        %s2420 = scalar_lea.vmem %s12, %s2419
      $region80: #{tpu_custom_call.1} parent=75 // pred_fallthru
        _
    $region76: #{tpu_custom_call.1} parent=5 // pred_fallthru
      _
  $region6: #{tpu_custom_call.1} parent=0 // loop_footer
    %s22 = sadd.s32 1, %s18
  $region7: #{tpu_custom_call.1} parent=0 // loop_footer_branch
    %17 = sbr.rel target = $region3
  $region8: #{tpu_custom_call.1} parent=0 // loop_exit
    _

</llo_original>
